<compile_context>
chip_gen: v5e
topology: v5e:2x2
jax: 0.10.0
libtpu: 0.0.40
codegen_flags: <defaults>
</compile_context>

<pallas_src>
from typing import NamedTuple

import jax
import jax.numpy as jnp
from jax.experimental import pallas as pl
from jax.experimental.pallas import tpu as pltpu

HIDDEN = 2048
H_CHUNK = 512               # hidden-dim chunk: overlaps VPU epilogue with MXU
LANE = 128
SUBLANE_BF16 = 16           # bf16 packs 16 rows per sublane tile


def _round_up(v, m):
    return (v + m - 1) // m * m


class MLPParams(NamedTuple):
    w1: jax.Array       # (n_pad, HIDDEN) bf16, zero-padded rows
    b1: jax.Array       # (1, HIDDEN)     f32
    w2: jax.Array       # (HIDDEN, n_pad) bf16, zero-padded cols
    b2: jax.Array       # (1, n_pad)      f32, zero-padded
    n_units: int


def prep_params(w1, b1, w2, b2):
    """One-time parameter prep (cast to bf16 + lane-pad).  Hoisted out of the
    per-forward path so no per-call weight copy/cast HBM traffic remains."""
    n_units = w1.shape[0]
    n_pad = _round_up(n_units, LANE)
    w1_p = jnp.pad(w1.astype(jnp.bfloat16), ((0, n_pad - n_units), (0, 0)))
    w2_p = jnp.pad(w2.astype(jnp.bfloat16), ((0, 0), (0, n_pad - n_units)))
    b1_2d = b1.astype(jnp.float32).reshape(1, HIDDEN)
    b2_2d = jnp.pad(b2.astype(jnp.float32), (0, n_pad - n_units)).reshape(1, n_pad)
    return MLPParams(w1_p, b1_2d, w2_p, b2_2d, n_units)


def mlp_kernel(x_ref, w1_ref, b1_ref, w2_ref, b2_ref, o_ref):
    # x_ref : (tm, n_pad)      bf16 tile of flattened (padded) inputs
    # w1_ref: (n_pad, 2048)    bf16, resident (single-buffered)
    # b1_ref: (1, 2048)        f32
    # w2_ref: (2048, n_pad)    bf16, resident (single-buffered)
    # b2_ref: (1, n_pad)       f32
    # o_ref : (tm, n_pad)      x.dtype
    x = x_ref[...]
    acc = jnp.zeros((x.shape[0], o_ref.shape[-1]), jnp.float32)
    # Chunk the 2048-wide hidden dim so dot1 of chunk j+1 can overlap the VPU
    # epilogue (bias + ReLU in f32 + bf16 cast) and dot2-accumulate of chunk j.
    for j in range(HIDDEN // H_CHUNK):
        lo = j * H_CHUNK
        h = jnp.dot(x, w1_ref[:, lo:lo + H_CHUNK],
                    preferred_element_type=jnp.float32)
        h = jnp.maximum(h + b1_ref[:, lo:lo + H_CHUNK], 0.0)   # f32 epilogue
        # TODO(synk): nn.Dropout(0.1) — eval-mode identity here; training mode
        # would use pltpu.prng_seed + pltpu.stateful_bernoulli and 1/(1-p).
        acc = acc + jnp.dot(h.astype(w2_ref.dtype), w2_ref[lo:lo + H_CHUNK, :],
                            preferred_element_type=jnp.float32)
    o_ref[...] = (acc + b2_ref[...]).astype(o_ref.dtype)


def _vmem_capacity_bytes():
    try:
        return int(pltpu.get_tpu_info().vmem_capacity_bytes)
    except Exception:
        return 64 * 1024 * 1024          # conservative fallback (v7x per-TC VMEM)


def _choose_m_tiling(m, tile_m):
    """Pick (tm, m_pad): tm a multiple of 16 (bf16 sublane packing), minimal
    padding for awkward M, and >=2 grid steps when M allows (v7x: 2 TCs)."""
    m16 = _round_up(max(m, 1), SUBLANE_BF16)
    steps = -(-m16 // tile_m)            # ceil
    if steps == 1 and m16 >= 2 * SUBLANE_BF16:
        steps = 2
    tm = _round_up(-(-m16 // steps), SUBLANE_BF16)
    return tm, steps * tm


def mlp_forward(x, params: MLPParams, *, tile_m=512):
    """x: (..., n_units).  params: output of prep_params()."""
    n_units = params.n_units
    assert x.shape[-1] == n_units
    orig_shape = x.shape
    x2 = x.reshape(-1, n_units)
    m = x2.shape[0]
    n_pad = params.w1.shape[0]

    tm, m_pad = _choose_m_tiling(m, tile_m)
    grid = (m_pad // tm,)

    x_p = jnp.pad(x2.astype(jnp.bfloat16),
                  ((0, m_pad - m), (0, n_pad - n_units)))

    out_dtype = x.dtype
    out_isz = jnp.dtype(out_dtype).itemsize

    # Resident VMEM footprint: double-buffered x/out tiles, single-buffered
    # weights/biases (constant index maps), chunked hidden intermediate.
    vmem_bytes = (
        2 * tm * n_pad * 2                 # x tiles (bf16, double-buffered)
        + 2 * tm * n_pad * out_isz         # out tiles (double-buffered)
        + n_pad * HIDDEN * 2               # w1 (bf16, single-buffered)
        + HIDDEN * n_pad * 2               # w2 (bf16, single-buffered)
        + (HIDDEN + n_pad) * 4             # biases (f32)
        + tm * H_CHUNK * (4 + 2)           # hidden chunk (f32 + bf16 copy)
        + tm * n_pad * 4                   # f32 accumulator
    )
    vmem_limit = int(min(max(2 * vmem_bytes, 32 * 1024 * 1024),
                         (_vmem_capacity_bytes() * 9) // 10))

    cost = pl.CostEstimate(
        flops=4 * m_pad * n_pad * HIDDEN,              # two matmuls
        transcendentals=0,
        bytes_accessed=(x_p.size * 2 + params.w1.size * 2 + params.w2.size * 2
                        + params.b1.size * 4 + params.b2.size * 4
                        + m_pad * n_pad * out_isz),
    )

    resident = dict(pipeline_mode=pl.Buffered(1))      # revisited blocks: 1 buffer

    out = pl.pallas_call(
        mlp_kernel,
        out_shape=jax.ShapeDtypeStruct((m_pad, n_pad), out_dtype),
        grid_spec=pltpu.PrefetchScalarGridSpec(
            num_scalar_prefetch=0,
            grid=grid,
            in_specs=[
                pl.BlockSpec((tm, n_pad), lambda i: (i, 0)),                  # x tile
                pl.BlockSpec((n_pad, HIDDEN), lambda i: (0, 0), **resident),  # w1
                pl.BlockSpec((1, HIDDEN), lambda i: (0, 0), **resident),      # b1
                pl.BlockSpec((HIDDEN, n_pad), lambda i: (0, 0), **resident),  # w2
                pl.BlockSpec((1, n_pad), lambda i: (0, 0), **resident),       # b2
            ],
            out_specs=pl.BlockSpec((tm, n_pad), lambda i: (i, 0)),
        ),
        compiler_params=pltpu.CompilerParams(
            dimension_semantics=("parallel",),
            vmem_limit_bytes=vmem_limit,
        ),
        cost_estimate=cost,
    )(x_p, params.w1, params.b1, params.w2, params.b2)

    return out[:m, :n_units].reshape(orig_shape)


def init_params(key, n_units):
    """Deterministic parameter init (shapes match the PyTorch module)."""
    k1, k2, k3, k4 = jax.random.split(key, 4)
    # torch stores Linear weight as (out, in); we keep (in, out) for the kernel.
    bound1 = 1.0 / (n_units ** 0.5)
    bound2 = 1.0 / (HIDDEN ** 0.5)
    w1 = jax.random.uniform(k1, (n_units, HIDDEN), jnp.float32, -bound1, bound1)
    b1 = jax.random.uniform(k2, (HIDDEN,), jnp.float32, -bound1, bound1)
    w2 = jax.random.uniform(k3, (HIDDEN, n_units), jnp.float32, -bound2, bound2)
    b2 = jax.random.uniform(k4, (n_units,), jnp.float32, -bound2, bound2)
    return w1, b1, w2, b2


def _reference(x, w1, b1, w2, b2):
    # Matches the kernel's numerics: bf16 matmul inputs, f32 accumulation.
    n_units = x.shape[-1]
    x2 = x.reshape(-1, n_units)
    h = jnp.dot(x2.astype(jnp.bfloat16), w1.astype(jnp.bfloat16),
                preferred_element_type=jnp.float32)
    h = jnp.maximum(h + b1, 0.0)
    y = jnp.dot(h.astype(jnp.bfloat16), w2.astype(jnp.bfloat16),
                preferred_element_type=jnp.float32)
    return (y + b2).reshape(x.shape)


if __name__ == "__main__":
    key = jax.random.PRNGKey(0)
    kx, kp = jax.random.split(key)

    B, S, N_UNITS = 2, 8, 32            # batch=2, seq=8, n_units=32
    x = jax.random.normal(kx, (B, S, N_UNITS), dtype=jnp.float32)
    w1, b1, w2, b2 = init_params(kp, N_UNITS)
    params = prep_params(w1, b1, w2, b2)   # one-time weight cast/pad (hoisted)

    y = jax.block_until_ready(mlp_forward(x, params))
    assert y.shape == x.shape
    ref = _reference(x, w1, b1, w2, b2)
    assert jnp.allclose(y, ref, atol=1e-2, rtol=1e-2)

    # Awkward M (400 rows): exercises minimal-pad tiling (tm=208, m_pad=416)
    # and a 2-step "parallel" grid (both v7x TensorCores active).
    x_big = jax.random.normal(jax.random.PRNGKey(1), (2, 200, N_UNITS),
                              dtype=jnp.float32)
    y_big = jax.block_until_ready(mlp_forward(x_big, params))
    ref_big = _reference(x_big, w1, b1, w2, b2)
    assert y_big.shape == x_big.shape
    assert jnp.allclose(y_big, ref_big, atol=1e-2, rtol=1e-2)

    print("KERNEL_OK")
</pallas_src>

<mosaic_0001>
module attributes {stable_mosaic.version = 11 : i64} {
  func.func @mlp_kernel(%arg0: i32, %arg1: memref<16x128xbf16, #tpu.memory_space<vmem>>, %arg2: memref<128x2048xbf16, #tpu.memory_space<vmem>>, %arg3: memref<1x2048xf32, #tpu.memory_space<vmem>>, %arg4: memref<2048x128xbf16, #tpu.memory_space<vmem>>, %arg5: memref<1x128xf32, #tpu.memory_space<vmem>>, %arg6: memref<16x128xf32, #tpu.memory_space<vmem>>) attributes {dimension_semantics = [#tpu.dimension_semantics<parallel>], iteration_bounds = array<i64: 1>, scalar_prefetch = 0 : i64, scratch_operands = 0 : i64, tpu.core_type = #tpu.core_type<tc>, window_params = [{transform_indices = @transform_0, window_bounds = array<i64: 16, 128>}, {pipeline_mode = #tpu.pipeline_mode<synchronous>, transform_indices = @transform_1, window_bounds = array<i64: 128, 2048>}, {pipeline_mode = #tpu.pipeline_mode<synchronous>, transform_indices = @transform_2, window_bounds = array<i64: 1, 2048>}, {pipeline_mode = #tpu.pipeline_mode<synchronous>, transform_indices = @transform_3, window_bounds = array<i64: 2048, 128>}, {pipeline_mode = #tpu.pipeline_mode<synchronous>, transform_indices = @transform_4, window_bounds = array<i64: 1, 128>}, {transform_indices = @transform_5, window_bounds = array<i64: 16, 128>}]} {
    %c0 = arith.constant 0 : index
    %c0_0 = arith.constant 0 : index
    %0 = vector.load %arg1[%c0, %c0_0] : memref<16x128xbf16, #tpu.memory_space<vmem>>, vector<16x128xbf16>
    %cst = arith.constant 0.000000e+00 : f32
    %1 = vector.broadcast %cst : f32 to vector<16x128xf32>
    %c0_1 = arith.constant 0 : index
    %c0_2 = arith.constant 0 : index
    %2 = vector.load %arg2[%c0_1, %c0_2] : memref<128x2048xbf16, #tpu.memory_space<vmem>>, vector<128x512xbf16>
    %cst_3 = arith.constant dense<0.000000e+00> : vector<16x512xf32>
    %3 = tpu.matmul %0, %2, %cst_3 {dimension_numbers = #tpu.dot_dimension_numbers<[1], [0], [0], [1], [0, 0, 1, 1], [], []>} : vector<16x128xbf16>, vector<128x512xbf16>, vector<16x512xf32> -> vector<16x512xf32>
    %c0_4 = arith.constant 0 : index
    %c0_5 = arith.constant 0 : index
    %4 = vector.load %arg3[%c0_4, %c0_5] : memref<1x2048xf32, #tpu.memory_space<vmem>>, vector<1x512xf32>
    %5 = vector.broadcast %4 : vector<1x512xf32> to vector<16x512xf32>
    %6 = arith.addf %3, %5 : vector<16x512xf32>
    %cst_6 = arith.constant 0.000000e+00 : f32
    %7 = vector.broadcast %cst_6 : f32 to vector<16x512xf32>
    %8 = arith.maximumf %6, %7 : vector<16x512xf32>
    %9 = arith.truncf %8 : vector<16x512xf32> to vector<16x512xbf16>
    %c0_7 = arith.constant 0 : index
    %c0_8 = arith.constant 0 : index
    %10 = vector.load %arg4[%c0_7, %c0_8] : memref<2048x128xbf16, #tpu.memory_space<vmem>>, vector<512x128xbf16>
    %cst_9 = arith.constant dense<0.000000e+00> : vector<16x128xf32>
    %11 = tpu.matmul %9, %10, %cst_9 {dimension_numbers = #tpu.dot_dimension_numbers<[1], [0], [0], [1], [0, 0, 1, 1], [], []>} : vector<16x512xbf16>, vector<512x128xbf16>, vector<16x128xf32> -> vector<16x128xf32>
    %12 = arith.addf %1, %11 : vector<16x128xf32>
    %c0_10 = arith.constant 0 : index
    %c512 = arith.constant 512 : index
    %13 = vector.load %arg2[%c0_10, %c512] : memref<128x2048xbf16, #tpu.memory_space<vmem>>, vector<128x512xbf16>
    %cst_11 = arith.constant dense<0.000000e+00> : vector<16x512xf32>
    %14 = tpu.matmul %0, %13, %cst_11 {dimension_numbers = #tpu.dot_dimension_numbers<[1], [0], [0], [1], [0, 0, 1, 1], [], []>} : vector<16x128xbf16>, vector<128x512xbf16>, vector<16x512xf32> -> vector<16x512xf32>
    %c0_12 = arith.constant 0 : index
    %c512_13 = arith.constant 512 : index
    %15 = vector.load %arg3[%c0_12, %c512_13] : memref<1x2048xf32, #tpu.memory_space<vmem>>, vector<1x512xf32>
    %16 = vector.broadcast %15 : vector<1x512xf32> to vector<16x512xf32>
    %17 = arith.addf %14, %16 : vector<16x512xf32>
    %cst_14 = arith.constant 0.000000e+00 : f32
    %18 = vector.broadcast %cst_14 : f32 to vector<16x512xf32>
    %19 = arith.maximumf %17, %18 : vector<16x512xf32>
    %20 = arith.truncf %19 : vector<16x512xf32> to vector<16x512xbf16>
    %c512_15 = arith.constant 512 : index
    %c0_16 = arith.constant 0 : index
    %21 = vector.load %arg4[%c512_15, %c0_16] : memref<2048x128xbf16, #tpu.memory_space<vmem>>, vector<512x128xbf16>
    %cst_17 = arith.constant dense<0.000000e+00> : vector<16x128xf32>
    %22 = tpu.matmul %20, %21, %cst_17 {dimension_numbers = #tpu.dot_dimension_numbers<[1], [0], [0], [1], [0, 0, 1, 1], [], []>} : vector<16x512xbf16>, vector<512x128xbf16>, vector<16x128xf32> -> vector<16x128xf32>
    %23 = arith.addf %12, %22 : vector<16x128xf32>
    %c0_18 = arith.constant 0 : index
    %c1024 = arith.constant 1024 : index
    %24 = vector.load %arg2[%c0_18, %c1024] : memref<128x2048xbf16, #tpu.memory_space<vmem>>, vector<128x512xbf16>
    %cst_19 = arith.constant dense<0.000000e+00> : vector<16x512xf32>
    %25 = tpu.matmul %0, %24, %cst_19 {dimension_numbers = #tpu.dot_dimension_numbers<[1], [0], [0], [1], [0, 0, 1, 1], [], []>} : vector<16x128xbf16>, vector<128x512xbf16>, vector<16x512xf32> -> vector<16x512xf32>
    %c0_20 = arith.constant 0 : index
    %c1024_21 = arith.constant 1024 : index
    %26 = vector.load %arg3[%c0_20, %c1024_21] : memref<1x2048xf32, #tpu.memory_space<vmem>>, vector<1x512xf32>
    %27 = vector.broadcast %26 : vector<1x512xf32> to vector<16x512xf32>
    %28 = arith.addf %25, %27 : vector<16x512xf32>
    %cst_22 = arith.constant 0.000000e+00 : f32
    %29 = vector.broadcast %cst_22 : f32 to vector<16x512xf32>
    %30 = arith.maximumf %28, %29 : vector<16x512xf32>
    %31 = arith.truncf %30 : vector<16x512xf32> to vector<16x512xbf16>
    %c1024_23 = arith.constant 1024 : index
    %c0_24 = arith.constant 0 : index
    %32 = vector.load %arg4[%c1024_23, %c0_24] : memref<2048x128xbf16, #tpu.memory_space<vmem>>, vector<512x128xbf16>
    %cst_25 = arith.constant dense<0.000000e+00> : vector<16x128xf32>
    %33 = tpu.matmul %31, %32, %cst_25 {dimension_numbers = #tpu.dot_dimension_numbers<[1], [0], [0], [1], [0, 0, 1, 1], [], []>} : vector<16x512xbf16>, vector<512x128xbf16>, vector<16x128xf32> -> vector<16x128xf32>
    %34 = arith.addf %23, %33 : vector<16x128xf32>
    %c0_26 = arith.constant 0 : index
    %c1536 = arith.constant 1536 : index
    %35 = vector.load %arg2[%c0_26, %c1536] : memref<128x2048xbf16, #tpu.memory_space<vmem>>, vector<128x512xbf16>
    %cst_27 = arith.constant dense<0.000000e+00> : vector<16x512xf32>
    %36 = tpu.matmul %0, %35, %cst_27 {dimension_numbers = #tpu.dot_dimension_numbers<[1], [0], [0], [1], [0, 0, 1, 1], [], []>} : vector<16x128xbf16>, vector<128x512xbf16>, vector<16x512xf32> -> vector<16x512xf32>
    %c0_28 = arith.constant 0 : index
    %c1536_29 = arith.constant 1536 : index
    %37 = vector.load %arg3[%c0_28, %c1536_29] : memref<1x2048xf32, #tpu.memory_space<vmem>>, vector<1x512xf32>
    %38 = vector.broadcast %37 : vector<1x512xf32> to vector<16x512xf32>
    %39 = arith.addf %36, %38 : vector<16x512xf32>
    %cst_30 = arith.constant 0.000000e+00 : f32
    %40 = vector.broadcast %cst_30 : f32 to vector<16x512xf32>
    %41 = arith.maximumf %39, %40 : vector<16x512xf32>
    %42 = arith.truncf %41 : vector<16x512xf32> to vector<16x512xbf16>
    %c1536_31 = arith.constant 1536 : index
    %c0_32 = arith.constant 0 : index
    %43 = vector.load %arg4[%c1536_31, %c0_32] : memref<2048x128xbf16, #tpu.memory_space<vmem>>, vector<512x128xbf16>
    %cst_33 = arith.constant dense<0.000000e+00> : vector<16x128xf32>
    %44 = tpu.matmul %42, %43, %cst_33 {dimension_numbers = #tpu.dot_dimension_numbers<[1], [0], [0], [1], [0, 0, 1, 1], [], []>} : vector<16x512xbf16>, vector<512x128xbf16>, vector<16x128xf32> -> vector<16x128xf32>
    %45 = arith.addf %34, %44 : vector<16x128xf32>
    %c0_34 = arith.constant 0 : index
    %c0_35 = arith.constant 0 : index
    %46 = vector.load %arg5[%c0_34, %c0_35] : memref<1x128xf32, #tpu.memory_space<vmem>>, vector<1x128xf32>
    %47 = vector.broadcast %46 : vector<1x128xf32> to vector<16x128xf32>
    %48 = arith.addf %45, %47 : vector<16x128xf32>
    %c0_36 = arith.constant 0 : index
    %c0_37 = arith.constant 0 : index
    %49 = vector.load %arg6[%c0_36, %c0_37] : memref<16x128xf32, #tpu.memory_space<vmem>>, vector<16x128xf32>
    tpu.vector_store %arg6[%c0_36, %c0_37], %48 {strides = array<i32>} : memref<16x128xf32, #tpu.memory_space<vmem>>, vector<16x128xf32>,
    return
  }
  func.func @transform_0(%arg0: i32) -> (i32, i32) {
    %c0_i32 = arith.constant 0 : i32
    %c0_i32_0 = arith.constant 0 : i32
    return %arg0, %c0_i32 : i32, i32
  }
  func.func @transform_1(%arg0: i32) -> (i32, i32) {
    %c0_i32 = arith.constant 0 : i32
    %c0_i32_0 = arith.constant 0 : i32
    %c0_i32_1 = arith.constant 0 : i32
    return %c0_i32, %c0_i32_0 : i32, i32
  }
  func.func @transform_2(%arg0: i32) -> (i32, i32) {
    %c0_i32 = arith.constant 0 : i32
    %c0_i32_0 = arith.constant 0 : i32
    %c0_i32_1 = arith.constant 0 : i32
    return %c0_i32, %c0_i32_0 : i32, i32
  }
  func.func @transform_3(%arg0: i32) -> (i32, i32) {
    %c0_i32 = arith.constant 0 : i32
    %c0_i32_0 = arith.constant 0 : i32
    %c0_i32_1 = arith.constant 0 : i32
    return %c0_i32, %c0_i32_0 : i32, i32
  }
  func.func @transform_4(%arg0: i32) -> (i32, i32) {
    %c0_i32 = arith.constant 0 : i32
    %c0_i32_0 = arith.constant 0 : i32
    %c0_i32_1 = arith.constant 0 : i32
    return %c0_i32, %c0_i32_0 : i32, i32
  }
  func.func @transform_5(%arg0: i32) -> (i32, i32) {
    %c0_i32 = arith.constant 0 : i32
    %c0_i32_0 = arith.constant 0 : i32
    return %arg0, %c0_i32 : i32, i32
  }
}

</mosaic_0001>

<llo_original>
// kernel: tpu_custom_call.1
$region0: #{tpu_custom_call.1}
  #allocation0 [shape = 'u32[]', space=smem, size = 0x4, offset = 0x4, fixed_abs, tag = 'smem constant byte address 0x4 - core index']
  #allocation1 [shape = 'u32[72,128]{1,0:T(1,128)}', space=vmem, size = 0x9000, scoped, tag = 'internal scratch']
  %s0 = inlined_call_operand.hbm [shape: bf16[16,128], index: 0, kind: input, shape index: {}]
  %s1 = inlined_call_operand.hbm [shape: bf16[128,2048], index: 1, kind: input, shape index: {}]
  %s2 = inlined_call_operand.hbm [shape: f32[1,2048], index: 2, kind: input, shape index: {}]
  %s3 = inlined_call_operand.hbm [shape: bf16[2048,128], index: 3, kind: input, shape index: {}]
  %s4 = inlined_call_operand.vmem [shape: f32[1,128], index: 4, kind: input, shape index: {}]
  %s5 = inlined_call_operand.hbm [shape: f32[16,128], index: 5, kind: output, shape index: {}]
  %s6 = sld [smem:[#allocation0]]
  $region46: #{tpu_custom_call.1} parent=0
    _
  %s8 = ssub.s32 1, %s6
  %s9 = scalar_select 0, %s8, %s6
  $region1: #{tpu_custom_call.1} parent=0
    #allocation2 [shape = 'u8[4096]{0}', space=vmem, size = 0x1000, scoped, tag = 'input window, operand 0, single buffered']
    #allocation3 [shape = 's32[1]{0}', space=sflag, size = 0x4, scoped, tag = 'scoped memory for tpu_custom_call.1']
    #allocation4 [shape = 's32[1]{0}', space=sflag, size = 0x4, scoped, tag = 'scoped memory for tpu_custom_call.1']
    #allocation5 [shape = 'u8[524288]{0}', space=vmem, size = 0x80000, scoped, tag = 'input window, operand 1, single buffered']
    #allocation6 [shape = 's32[1]{0}', space=sflag, size = 0x4, scoped, tag = 'scoped memory for tpu_custom_call.1']
    #allocation7 [shape = 'u8[8192]{0}', space=vmem, size = 0x2000, scoped, tag = 'input window, operand 2, single buffered']
    #allocation8 [shape = 'u8[524288]{0}', space=vmem, size = 0x80000, scoped, tag = 'input window, operand 3, single buffered']
    #allocation9 [shape = 's32[1]{0}', space=sflag, size = 0x4, scoped, tag = 'scoped memory for tpu_custom_call.1']
    #allocation10 [shape = 'u8[8192]{0}', space=vmem, size = 0x2000, scoped, tag = 'output window, operand 0, single buffered']
    %10 = vsyncpa [#allocation3], 0
    %11 = vsyncpa [#allocation6], 0
    %12 = vsyncpa [#allocation9], 0
    %13 = vsyncpa [#allocation4], 0
    // Predicated region
    $region2: #{tpu_custom_call.1} parent=1 // pred_check
      _
    $region3: #{tpu_custom_call.1} parent=1 // pred_check_branch
      %15 = sbr.rel (0) target = $region5
    $region4: #{tpu_custom_call.1} parent=1 // pred_region
      %17 = vsyncadd [#allocation3], 0
      %s18 = sshll.u32 %s0, 4
      %s19 = int_to_ptr.hbm [resolvable:$true] %s18
      %s20 = sshll.u32 [#allocation2], 4
      %s21 = int_to_ptr.vmem [resolvable:$true] %s20
      %26 = dma.hbm_to_vmem [thread:$0]  %s19, 128, %s21, [#allocation3], 64, 64, 4
    $region5: #{tpu_custom_call.1} parent=1 // pred_fallthru
      _
    // Predicated region
    $region6: #{tpu_custom_call.1} parent=1 // pred_check
      _
    $region7: #{tpu_custom_call.1} parent=1 // pred_check_branch
      %28 = sbr.rel (0) target = $region9
    $region8: #{tpu_custom_call.1} parent=1 // pred_region
      %30 = vsyncadd [#allocation6], 0
      %s31 = sshll.u32 %s1, 4
      %s32 = int_to_ptr.hbm [resolvable:$true] %s31
      %s33 = sshll.u32 [#allocation5], 4
      %s34 = int_to_ptr.vmem [resolvable:$true] %s33
      %39 = dma.hbm_to_vmem [thread:$0]  %s32, 16384, %s34, [#allocation6], 1024, 1024, 64
    $region9: #{tpu_custom_call.1} parent=1 // pred_fallthru
      _
    // Predicated region
    $region10: #{tpu_custom_call.1} parent=1 // pred_check
      _
    $region11: #{tpu_custom_call.1} parent=1 // pred_check_branch
      %41 = sbr.rel (0) target = $region13
    $region12: #{tpu_custom_call.1} parent=1 // pred_region
      %43 = vsyncadd [#allocation6], 0
      %s45 = sshll.u32 %s2, 4
      %s46 = int_to_ptr.hbm [resolvable:$true] %s45
      %s47 = sshll.u32 [#allocation7], 4
      %s48 = int_to_ptr.vmem [resolvable:$true] %s47
      %50 = dma.hbm_to_vmem [thread:$0]  %s46, 256, %s48, [#allocation6]
    $region13: #{tpu_custom_call.1} parent=1 // pred_fallthru
      _
    // Predicated region
    $region14: #{tpu_custom_call.1} parent=1 // pred_check
      _
    $region15: #{tpu_custom_call.1} parent=1 // pred_check_branch
      %52 = sbr.rel (0) target = $region17
    $region16: #{tpu_custom_call.1} parent=1 // pred_region
      %54 = vsyncadd [#allocation9], 0
      %s55 = sshll.u32 %s3, 4
      %s56 = int_to_ptr.hbm [resolvable:$true] %s55
      %s57 = sshll.u32 [#allocation8], 4
      %s58 = int_to_ptr.vmem [resolvable:$true] %s57
      %63 = dma.hbm_to_vmem [thread:$0]  %s56, 16384, %s58, [#allocation9], 64, 64, 4
    $region17: #{tpu_custom_call.1} parent=1 // pred_fallthru
      _
    // Predicated region
    $region18: #{tpu_custom_call.1} parent=1 // pred_check
      _
    $region19: #{tpu_custom_call.1} parent=1 // pred_check_branch
      %65 = sbr.rel (0) target = $region21
    $region20: #{tpu_custom_call.1} parent=1 // pred_region
      _
    $region21: #{tpu_custom_call.1} parent=1 // pred_fallthru
      _
    // Predicated region
    $region22: #{tpu_custom_call.1} parent=1 // pred_check
      _
    $region23: #{tpu_custom_call.1} parent=1 // pred_check_branch
      %67 = sbr.rel (0) target = $region25
    $region24: #{tpu_custom_call.1} parent=1 // pred_region
      %69 = dma.done [#allocation3], 128
    $region25: #{tpu_custom_call.1} parent=1 // pred_fallthru
      _
    // Predicated region
    $region26: #{tpu_custom_call.1} parent=1 // pred_check
      _
    $region27: #{tpu_custom_call.1} parent=1 // pred_check_branch
      %71 = sbr.rel (0) target = $region29
    $region28: #{tpu_custom_call.1} parent=1 // pred_region
      %73 = dma.done [#allocation6], 16384
    $region29: #{tpu_custom_call.1} parent=1 // pred_fallthru
      _
    // Predicated region
    $region30: #{tpu_custom_call.1} parent=1 // pred_check
      _
    $region31: #{tpu_custom_call.1} parent=1 // pred_check_branch
      %75 = sbr.rel (0) target = $region33
    $region32: #{tpu_custom_call.1} parent=1 // pred_region
      %77 = dma.done [#allocation6], 256
    $region33: #{tpu_custom_call.1} parent=1 // pred_fallthru
      _
    // Predicated region
    $region34: #{tpu_custom_call.1} parent=1 // pred_check
      _
    $region35: #{tpu_custom_call.1} parent=1 // pred_check_branch
      %79 = sbr.rel (0) target = $region37
    $region36: #{tpu_custom_call.1} parent=1 // pred_region
      %81 = dma.done [#allocation9], 16384
    $region37: #{tpu_custom_call.1} parent=1 // pred_fallthru
      _
    %v82 = vld [vmem:[#allocation2] sm:$0xf]
    %v83 = vld [vmem:[#allocation2 + $0x4] sm:$0xf]
    %v84 = vld [vmem:[#allocation5] sm:$0xff]
    %v85 = vld [vmem:[#allocation5 + $0x8] sm:$0xff]
    %v86 = vld [vmem:[#allocation5 + $0x40] sm:$0xff]
    %v87 = vld [vmem:[#allocation5 + $0x48] sm:$0xff]
    %v88 = vld [vmem:[#allocation5 + $0x80] sm:$0xff]
    %v89 = vld [vmem:[#allocation5 + $0x88] sm:$0xff]
    %v90 = vld [vmem:[#allocation5 + $0xc0] sm:$0xff]
    %v91 = vld [vmem:[#allocation5 + $0xc8] sm:$0xff]
    %v92 = vld [vmem:[#allocation5 + $0x100] sm:$0xff]
    %v93 = vld [vmem:[#allocation5 + $0x108] sm:$0xff]
    %v94 = vld [vmem:[#allocation5 + $0x140] sm:$0xff]
    %v95 = vld [vmem:[#allocation5 + $0x148] sm:$0xff]
    %v96 = vld [vmem:[#allocation5 + $0x180] sm:$0xff]
    %v97 = vld [vmem:[#allocation5 + $0x188] sm:$0xff]
    %v98 = vld [vmem:[#allocation5 + $0x1c0] sm:$0xff]
    %v99 = vld [vmem:[#allocation5 + $0x1c8] sm:$0xff]
    %v100 = vld [vmem:[#allocation5 + $0x200] sm:$0xff]
    %v101 = vld [vmem:[#allocation5 + $0x208] sm:$0xff]
    %v102 = vld [vmem:[#allocation5 + $0x240] sm:$0xff]
    %v103 = vld [vmem:[#allocation5 + $0x248] sm:$0xff]
    %v104 = vld [vmem:[#allocation5 + $0x280] sm:$0xff]
    %v105 = vld [vmem:[#allocation5 + $0x288] sm:$0xff]
    %v106 = vld [vmem:[#allocation5 + $0x2c0] sm:$0xff]
    %v107 = vld [vmem:[#allocation5 + $0x2c8] sm:$0xff]
    %v108 = vld [vmem:[#allocation5 + $0x300] sm:$0xff]
    %v109 = vld [vmem:[#allocation5 + $0x308] sm:$0xff]
    %v110 = vld [vmem:[#allocation5 + $0x340] sm:$0xff]
    %v111 = vld [vmem:[#allocation5 + $0x348] sm:$0xff]
    %v112 = vld [vmem:[#allocation5 + $0x380] sm:$0xff]
    %v113 = vld [vmem:[#allocation5 + $0x388] sm:$0xff]
    %v114 = vld [vmem:[#allocation5 + $0x3c0] sm:$0xff]
    %v115 = vld [vmem:[#allocation5 + $0x3c8] sm:$0xff]
    %v116 = vld [vmem:[#allocation7] sm:$0xf]
    %v118 = vperm.slane %v116, 0
    %v119 = vperm.slane %v116, 1
    %v120 = vperm.slane %v116, 2
    %v121 = vperm.slane %v116, 3
    %v128 = vunpack.c.l.b16 %v82
    %v129 = vunpack.c.l.b16 %v83
    %v130 = vpack.c.b16 %v129, %v128
    %v164 = vunpack.c.l.b16 %v84
    %v165 = vunpack.c.h.b16 %v84
    %v166 = vunpack.c.l.b16 %v85
    %v167 = vunpack.c.h.b16 %v85
    %v168 = vunpack.c.l.b16 %v86
    %v169 = vunpack.c.h.b16 %v86
    %v170 = vunpack.c.l.b16 %v87
    %v171 = vunpack.c.h.b16 %v87
    %v172 = vunpack.c.l.b16 %v88
    %v173 = vunpack.c.h.b16 %v88
    %v174 = vunpack.c.l.b16 %v89
    %v175 = vunpack.c.h.b16 %v89
    %v176 = vunpack.c.l.b16 %v90
    %v177 = vunpack.c.h.b16 %v90
    %v178 = vunpack.c.l.b16 %v91
    %v179 = vunpack.c.h.b16 %v91
    %v180 = vunpack.c.l.b16 %v92
    %v181 = vunpack.c.h.b16 %v92
    %v182 = vunpack.c.l.b16 %v93
    %v183 = vunpack.c.h.b16 %v93
    %v184 = vunpack.c.l.b16 %v94
    %v185 = vunpack.c.h.b16 %v94
    %v186 = vunpack.c.l.b16 %v95
    %v187 = vunpack.c.h.b16 %v95
    %v188 = vunpack.c.l.b16 %v96
    %v189 = vunpack.c.h.b16 %v96
    %v190 = vunpack.c.l.b16 %v97
    %v191 = vunpack.c.h.b16 %v97
    %v192 = vunpack.c.l.b16 %v98
    %v193 = vunpack.c.h.b16 %v98
    %v194 = vunpack.c.l.b16 %v99
    %v195 = vunpack.c.h.b16 %v99
    %v196 = vunpack.c.l.b16 %v100
    %v197 = vunpack.c.h.b16 %v100
    %v198 = vunpack.c.l.b16 %v101
    %v199 = vunpack.c.h.b16 %v101
    %v200 = vunpack.c.l.b16 %v102
    %v201 = vunpack.c.h.b16 %v102
    %v202 = vunpack.c.l.b16 %v103
    %v203 = vunpack.c.h.b16 %v103
    %v204 = vunpack.c.l.b16 %v104
    %v205 = vunpack.c.h.b16 %v104
    %v206 = vunpack.c.l.b16 %v105
    %v207 = vunpack.c.h.b16 %v105
    %v208 = vunpack.c.l.b16 %v106
    %v209 = vunpack.c.h.b16 %v106
    %v210 = vunpack.c.l.b16 %v107
    %v211 = vunpack.c.h.b16 %v107
    %v212 = vunpack.c.l.b16 %v108
    %v213 = vunpack.c.h.b16 %v108
    %v214 = vunpack.c.l.b16 %v109
    %v215 = vunpack.c.h.b16 %v109
    %v216 = vunpack.c.l.b16 %v110
    %v217 = vunpack.c.h.b16 %v110
    %v218 = vunpack.c.l.b16 %v111
    %v219 = vunpack.c.h.b16 %v111
    %v220 = vunpack.c.l.b16 %v112
    %v221 = vunpack.c.h.b16 %v112
    %v222 = vunpack.c.l.b16 %v113
    %v223 = vunpack.c.h.b16 %v113
    %v224 = vunpack.c.l.b16 %v114
    %v225 = vunpack.c.h.b16 %v114
    %v226 = vunpack.c.l.b16 %v115
    %v227 = vunpack.c.h.b16 %v115
    %v228 = vpack.c.b16 %v168, %v164
    %v229 = vpack.c.b16 %v169, %v165
    %v230 = vpack.c.b16 %v170, %v166
    %v231 = vpack.c.b16 %v171, %v167
    %v232 = vpack.c.b16 %v176, %v172
    %v233 = vpack.c.b16 %v177, %v173
    %v234 = vpack.c.b16 %v178, %v174
    %v235 = vpack.c.b16 %v179, %v175
    %v236 = vpack.c.b16 %v184, %v180
    %v237 = vpack.c.b16 %v185, %v181
    %v238 = vpack.c.b16 %v186, %v182
    %v239 = vpack.c.b16 %v187, %v183
    %v240 = vpack.c.b16 %v192, %v188
    %v241 = vpack.c.b16 %v193, %v189
    %v242 = vpack.c.b16 %v194, %v190
    %v243 = vpack.c.b16 %v195, %v191
    %v244 = vpack.c.b16 %v200, %v196
    %v245 = vpack.c.b16 %v201, %v197
    %v246 = vpack.c.b16 %v202, %v198
    %v247 = vpack.c.b16 %v203, %v199
    %v248 = vpack.c.b16 %v208, %v204
    %v249 = vpack.c.b16 %v209, %v205
    %v250 = vpack.c.b16 %v210, %v206
    %v251 = vpack.c.b16 %v211, %v207
    %v252 = vpack.c.b16 %v216, %v212
    %v253 = vpack.c.b16 %v217, %v213
    %v254 = vpack.c.b16 %v218, %v214
    %v255 = vpack.c.b16 %v219, %v215
    %v256 = vpack.c.b16 %v224, %v220
    %v257 = vpack.c.b16 %v225, %v221
    %v258 = vpack.c.b16 %v226, %v222
    %v259 = vpack.c.b16 %v227, %v223
    %292 = vmatpush.bf16.msra.mxu0 %v256
    %293 = vmatpush.bf16.msra.mxu0 %v252
    %294 = vmatpush.bf16.msra.mxu0 %v248
    %295 = vmatpush.bf16.msra.mxu0 %v244
    %296 = vmatpush.bf16.msra.mxu0 %v240
    %297 = vmatpush.bf16.msra.mxu0 %v236
    %298 = vmatpush.bf16.msra.mxu0 %v232
    %299 = vmatpush.bf16.msra.mxu0 %v228
    %300 = vmatmul.bf16.gmra.mxu0 %v130
    %v301 = vpop.f32.mrf.mxu0
    %v302 = vadd.f32 %v118, %v301
    %v303 = vpop.f32.mrf.mxu0
    %v304 = vadd.f32 %v118, %v303
    %305 = vdwg.mxu0
    %306 = vmatpush.bf16.msra.mxu0 %v257
    %307 = vmatpush.bf16.msra.mxu0 %v253
    %308 = vmatpush.bf16.msra.mxu0 %v249
    %309 = vmatpush.bf16.msra.mxu0 %v245
    %310 = vmatpush.bf16.msra.mxu0 %v241
    %311 = vmatpush.bf16.msra.mxu0 %v237
    %312 = vmatpush.bf16.msra.mxu0 %v233
    %313 = vmatpush.bf16.msra.mxu0 %v229
    %314 = vmatmul.bf16.gmra.mxu0 %v130
    %v315 = vpop.f32.mrf.mxu0
    %v316 = vadd.f32 %v119, %v315
    %v317 = vpop.f32.mrf.mxu0
    %v318 = vadd.f32 %v119, %v317
    %319 = vdwg.mxu0
    %320 = vmatpush.bf16.msra.mxu0 %v258
    %321 = vmatpush.bf16.msra.mxu0 %v254
    %322 = vmatpush.bf16.msra.mxu0 %v250
    %323 = vmatpush.bf16.msra.mxu0 %v246
    %324 = vmatpush.bf16.msra.mxu0 %v242
    %325 = vmatpush.bf16.msra.mxu0 %v238
    %326 = vmatpush.bf16.msra.mxu0 %v234
    %327 = vmatpush.bf16.msra.mxu0 %v230
    %328 = vmatmul.bf16.gmra.mxu0 %v130
    %v329 = vpop.f32.mrf.mxu0
    %v330 = vadd.f32 %v120, %v329
    %v331 = vpop.f32.mrf.mxu0
    %v332 = vadd.f32 %v120, %v331
    %333 = vdwg.mxu0
    %334 = vmatpush.bf16.msra.mxu0 %v259
    %335 = vmatpush.bf16.msra.mxu0 %v255
    %336 = vmatpush.bf16.msra.mxu0 %v251
    %337 = vmatpush.bf16.msra.mxu0 %v247
    %338 = vmatpush.bf16.msra.mxu0 %v243
    %339 = vmatpush.bf16.msra.mxu0 %v239
    %340 = vmatpush.bf16.msra.mxu0 %v235
    %341 = vmatpush.bf16.msra.mxu0 %v231
    %342 = vmatmul.bf16.gmra.mxu0 %v130
    %v343 = vpop.f32.mrf.mxu0
    %v344 = vadd.f32 %v121, %v343
    %v345 = vpop.f32.mrf.mxu0
    %v346 = vadd.f32 %v121, %v345
    %347 = vdwg.mxu0
    %v348 = vmax.f32 %v302, 0.0
    %v349 = vmax.f32 %v316, 0.0
    %v350 = vmax.f32 %v330, 0.0
    %v351 = vmax.f32 %v344, 0.0
    %v352 = vmax.f32 %v304, 0.0
    %v353 = vmax.f32 %v318, 0.0
    %v354 = vmax.f32 %v332, 0.0
    %v355 = vmax.f32 %v346, 0.0
    %v356 = vpack.c.bf16 %v352, %v348
    %v357 = vpack.c.bf16 %v353, %v349
    %v358 = vpack.c.bf16 %v354, %v350
    %v359 = vpack.c.bf16 %v355, %v351
    %v360 = vld [vmem:[#allocation8] sm:$0xf]
    %v361 = vld [vmem:[#allocation8 + $0x4] sm:$0xf]
    %v362 = vld [vmem:[#allocation8 + $0x8] sm:$0xf]
    %v363 = vld [vmem:[#allocation8 + $0xc] sm:$0xf]
    %v364 = vld [vmem:[#allocation8 + $0x10] sm:$0xf]
    %v365 = vld [vmem:[#allocation8 + $0x14] sm:$0xf]
    %v366 = vld [vmem:[#allocation8 + $0x18] sm:$0xf]
    %v367 = vld [vmem:[#allocation8 + $0x1c] sm:$0xf]
    %v368 = vld [vmem:[#allocation8 + $0x20] sm:$0xf]
    %v369 = vld [vmem:[#allocation8 + $0x24] sm:$0xf]
    %v370 = vld [vmem:[#allocation8 + $0x28] sm:$0xf]
    %v371 = vld [vmem:[#allocation8 + $0x2c] sm:$0xf]
    %v372 = vld [vmem:[#allocation8 + $0x30] sm:$0xf]
    %v373 = vld [vmem:[#allocation8 + $0x34] sm:$0xf]
    %v374 = vld [vmem:[#allocation8 + $0x38] sm:$0xf]
    %v375 = vld [vmem:[#allocation8 + $0x3c] sm:$0xf]
    %v376 = vld [vmem:[#allocation8 + $0x40] sm:$0xf]
    %v377 = vld [vmem:[#allocation8 + $0x44] sm:$0xf]
    %v378 = vld [vmem:[#allocation8 + $0x48] sm:$0xf]
    %v379 = vld [vmem:[#allocation8 + $0x4c] sm:$0xf]
    %v380 = vld [vmem:[#allocation8 + $0x50] sm:$0xf]
    %v381 = vld [vmem:[#allocation8 + $0x54] sm:$0xf]
    %v382 = vld [vmem:[#allocation8 + $0x58] sm:$0xf]
    %v383 = vld [vmem:[#allocation8 + $0x5c] sm:$0xf]
    %v384 = vld [vmem:[#allocation8 + $0x60] sm:$0xf]
    %v385 = vld [vmem:[#allocation8 + $0x64] sm:$0xf]
    %v386 = vld [vmem:[#allocation8 + $0x68] sm:$0xf]
    %v387 = vld [vmem:[#allocation8 + $0x6c] sm:$0xf]
    %v388 = vld [vmem:[#allocation8 + $0x70] sm:$0xf]
    %v389 = vld [vmem:[#allocation8 + $0x74] sm:$0xf]
    %v390 = vld [vmem:[#allocation8 + $0x78] sm:$0xf]
    %v391 = vld [vmem:[#allocation8 + $0x7c] sm:$0xf]
    %v392 = vld [vmem:[#allocation8 + $0x80] sm:$0xf]
    %v393 = vld [vmem:[#allocation8 + $0x84] sm:$0xf]
    %v394 = vld [vmem:[#allocation8 + $0x88] sm:$0xf]
    %v395 = vld [vmem:[#allocation8 + $0x8c] sm:$0xf]
    %v396 = vld [vmem:[#allocation8 + $0x90] sm:$0xf]
    %v397 = vld [vmem:[#allocation8 + $0x94] sm:$0xf]
    %v398 = vld [vmem:[#allocation8 + $0x98] sm:$0xf]
    %v399 = vld [vmem:[#allocation8 + $0x9c] sm:$0xf]
    %v400 = vld [vmem:[#allocation8 + $0xa0] sm:$0xf]
    %v401 = vld [vmem:[#allocation8 + $0xa4] sm:$0xf]
    %v402 = vld [vmem:[#allocation8 + $0xa8] sm:$0xf]
    %v403 = vld [vmem:[#allocation8 + $0xac] sm:$0xf]
    %v404 = vld [vmem:[#allocation8 + $0xb0] sm:$0xf]
    %v405 = vld [vmem:[#allocation8 + $0xb4] sm:$0xf]
    %v406 = vld [vmem:[#allocation8 + $0xb8] sm:$0xf]
    %v407 = vld [vmem:[#allocation8 + $0xbc] sm:$0xf]
    %v408 = vld [vmem:[#allocation8 + $0xc0] sm:$0xf]
    %v409 = vld [vmem:[#allocation8 + $0xc4] sm:$0xf]
    %v410 = vld [vmem:[#allocation8 + $0xc8] sm:$0xf]
    %v411 = vld [vmem:[#allocation8 + $0xcc] sm:$0xf]
    %v412 = vld [vmem:[#allocation8 + $0xd0] sm:$0xf]
    %v413 = vld [vmem:[#allocation8 + $0xd4] sm:$0xf]
    %v414 = vld [vmem:[#allocation8 + $0xd8] sm:$0xf]
    %v415 = vld [vmem:[#allocation8 + $0xdc] sm:$0xf]
    %v416 = vld [vmem:[#allocation8 + $0xe0] sm:$0xf]
    %v417 = vld [vmem:[#allocation8 + $0xe4] sm:$0xf]
    %v418 = vld [vmem:[#allocation8 + $0xe8] sm:$0xf]
    %v419 = vld [vmem:[#allocation8 + $0xec] sm:$0xf]
    %v420 = vld [vmem:[#allocation8 + $0xf0] sm:$0xf]
    %v421 = vld [vmem:[#allocation8 + $0xf4] sm:$0xf]
    %v422 = vld [vmem:[#allocation8 + $0xf8] sm:$0xf]
    %v423 = vld [vmem:[#allocation8 + $0xfc] sm:$0xf]
    %v424 = vld [vmem:[#allocation5 + $0x10] sm:$0xff]
    %v425 = vld [vmem:[#allocation5 + $0x18] sm:$0xff]
    %v426 = vld [vmem:[#allocation5 + $0x50] sm:$0xff]
    %v427 = vld [vmem:[#allocation5 + $0x58] sm:$0xff]
    %v428 = vld [vmem:[#allocation5 + $0x90] sm:$0xff]
    %v429 = vld [vmem:[#allocation5 + $0x98] sm:$0xff]
    %v430 = vld [vmem:[#allocation5 + $0xd0] sm:$0xff]
    %v431 = vld [vmem:[#allocation5 + $0xd8] sm:$0xff]
    %v432 = vld [vmem:[#allocation5 + $0x110] sm:$0xff]
    %v433 = vld [vmem:[#allocation5 + $0x118] sm:$0xff]
    %v434 = vld [vmem:[#allocation5 + $0x150] sm:$0xff]
    %v435 = vld [vmem:[#allocation5 + $0x158] sm:$0xff]
    %v436 = vld [vmem:[#allocation5 + $0x190] sm:$0xff]
    %v437 = vld [vmem:[#allocation5 + $0x198] sm:$0xff]
    %v438 = vld [vmem:[#allocation5 + $0x1d0] sm:$0xff]
    %v439 = vld [vmem:[#allocation5 + $0x1d8] sm:$0xff]
    %v440 = vld [vmem:[#allocation5 + $0x210] sm:$0xff]
    %v441 = vld [vmem:[#allocation5 + $0x218] sm:$0xff]
    %v442 = vld [vmem:[#allocation5 + $0x250] sm:$0xff]
    %v443 = vld [vmem:[#allocation5 + $0x258] sm:$0xff]
    %v444 = vld [vmem:[#allocation5 + $0x290] sm:$0xff]
    %v445 = vld [vmem:[#allocation5 + $0x298] sm:$0xff]
    %v446 = vld [vmem:[#allocation5 + $0x2d0] sm:$0xff]
    %v447 = vld [vmem:[#allocation5 + $0x2d8] sm:$0xff]
    %v448 = vld [vmem:[#allocation5 + $0x310] sm:$0xff]
    %v449 = vld [vmem:[#allocation5 + $0x318] sm:$0xff]
    %v450 = vld [vmem:[#allocation5 + $0x350] sm:$0xff]
    %v451 = vld [vmem:[#allocation5 + $0x358] sm:$0xff]
    %v452 = vld [vmem:[#allocation5 + $0x390] sm:$0xff]
    %v453 = vld [vmem:[#allocation5 + $0x398] sm:$0xff]
    %v454 = vld [vmem:[#allocation5 + $0x3d0] sm:$0xff]
    %v455 = vld [vmem:[#allocation5 + $0x3d8] sm:$0xff]
    %v456 = vld [vmem:[#allocation7 + $0x4] sm:$0xf]
    %v458 = vperm.slane %v456, 0
    %v459 = vperm.slane %v456, 1
    %v460 = vperm.slane %v456, 2
    %v461 = vperm.slane %v456, 3
    %v498 = vunpack.c.l.b16 %v424
    %v499 = vunpack.c.h.b16 %v424
    %v500 = vunpack.c.l.b16 %v425
    %v501 = vunpack.c.h.b16 %v425
    %v502 = vunpack.c.l.b16 %v426
    %v503 = vunpack.c.h.b16 %v426
    %v504 = vunpack.c.l.b16 %v427
    %v505 = vunpack.c.h.b16 %v427
    %v506 = vunpack.c.l.b16 %v428
    %v507 = vunpack.c.h.b16 %v428
    %v508 = vunpack.c.l.b16 %v429
    %v509 = vunpack.c.h.b16 %v429
    %v510 = vunpack.c.l.b16 %v430
    %v511 = vunpack.c.h.b16 %v430
    %v512 = vunpack.c.l.b16 %v431
    %v513 = vunpack.c.h.b16 %v431
    %v514 = vunpack.c.l.b16 %v432
    %v515 = vunpack.c.h.b16 %v432
    %v516 = vunpack.c.l.b16 %v433
    %v517 = vunpack.c.h.b16 %v433
    %v518 = vunpack.c.l.b16 %v434
    %v519 = vunpack.c.h.b16 %v434
    %v520 = vunpack.c.l.b16 %v435
    %v521 = vunpack.c.h.b16 %v435
    %v522 = vunpack.c.l.b16 %v436
    %v523 = vunpack.c.h.b16 %v436
    %v524 = vunpack.c.l.b16 %v437
    %v525 = vunpack.c.h.b16 %v437
    %v526 = vunpack.c.l.b16 %v438
    %v527 = vunpack.c.h.b16 %v438
    %v528 = vunpack.c.l.b16 %v439
    %v529 = vunpack.c.h.b16 %v439
    %v530 = vunpack.c.l.b16 %v440
    %v531 = vunpack.c.h.b16 %v440
    %v532 = vunpack.c.l.b16 %v441
    %v533 = vunpack.c.h.b16 %v441
    %v534 = vunpack.c.l.b16 %v442
    %v535 = vunpack.c.h.b16 %v442
    %v536 = vunpack.c.l.b16 %v443
    %v537 = vunpack.c.h.b16 %v443
    %v538 = vunpack.c.l.b16 %v444
    %v539 = vunpack.c.h.b16 %v444
    %v540 = vunpack.c.l.b16 %v445
    %v541 = vunpack.c.h.b16 %v445
    %v542 = vunpack.c.l.b16 %v446
    %v543 = vunpack.c.h.b16 %v446
    %v544 = vunpack.c.l.b16 %v447
    %v545 = vunpack.c.h.b16 %v447
    %v546 = vunpack.c.l.b16 %v448
    %v547 = vunpack.c.h.b16 %v448
    %v548 = vunpack.c.l.b16 %v449
    %v549 = vunpack.c.h.b16 %v449
    %v550 = vunpack.c.l.b16 %v450
    %v551 = vunpack.c.h.b16 %v450
    %v552 = vunpack.c.l.b16 %v451
    %v553 = vunpack.c.h.b16 %v451
    %v554 = vunpack.c.l.b16 %v452
    %v555 = vunpack.c.h.b16 %v452
    %v556 = vunpack.c.l.b16 %v453
    %v557 = vunpack.c.h.b16 %v453
    %v558 = vunpack.c.l.b16 %v454
    %v559 = vunpack.c.h.b16 %v454
    %v560 = vunpack.c.l.b16 %v455
    %v561 = vunpack.c.h.b16 %v455
    %v562 = vpack.c.b16 %v502, %v498
    %v563 = vpack.c.b16 %v503, %v499
    %v564 = vpack.c.b16 %v504, %v500
    %v565 = vpack.c.b16 %v505, %v501
    %v566 = vpack.c.b16 %v510, %v506
    %v567 = vpack.c.b16 %v511, %v507
    %v568 = vpack.c.b16 %v512, %v508
    %v569 = vpack.c.b16 %v513, %v509
    %v570 = vpack.c.b16 %v518, %v514
    %v571 = vpack.c.b16 %v519, %v515
    %v572 = vpack.c.b16 %v520, %v516
    %v573 = vpack.c.b16 %v521, %v517
    %v574 = vpack.c.b16 %v526, %v522
    %v575 = vpack.c.b16 %v527, %v523
    %v576 = vpack.c.b16 %v528, %v524
    %v577 = vpack.c.b16 %v529, %v525
    %v578 = vpack.c.b16 %v534, %v530
    %v579 = vpack.c.b16 %v535, %v531
    %v580 = vpack.c.b16 %v536, %v532
    %v581 = vpack.c.b16 %v537, %v533
    %v582 = vpack.c.b16 %v542, %v538
    %v583 = vpack.c.b16 %v543, %v539
    %v584 = vpack.c.b16 %v544, %v540
    %v585 = vpack.c.b16 %v545, %v541
    %v586 = vpack.c.b16 %v550, %v546
    %v587 = vpack.c.b16 %v551, %v547
    %v588 = vpack.c.b16 %v552, %v548
    %v589 = vpack.c.b16 %v553, %v549
    %v590 = vpack.c.b16 %v558, %v554
    %v591 = vpack.c.b16 %v559, %v555
    %v592 = vpack.c.b16 %v560, %v556
    %v593 = vpack.c.b16 %v561, %v557
    %626 = vmatpush.bf16.msra.mxu0 %v590
    %627 = vmatpush.bf16.msra.mxu0 %v586
    %628 = vmatpush.bf16.msra.mxu0 %v582
    %629 = vmatpush.bf16.msra.mxu0 %v578
    %630 = vmatpush.bf16.msra.mxu0 %v574
    %631 = vmatpush.bf16.msra.mxu0 %v570
    %632 = vmatpush.bf16.msra.mxu0 %v566
    %633 = vmatpush.bf16.msra.mxu0 %v562
    %634 = vmatmul.bf16.gmra.mxu0 %v130
    %v635 = vpop.f32.mrf.mxu0
    %v636 = vadd.f32 %v458, %v635
    %v637 = vpop.f32.mrf.mxu0
    %v638 = vadd.f32 %v458, %v637
    %639 = vdwg.mxu0
    %640 = vmatpush.bf16.msra.mxu0 %v591
    %641 = vmatpush.bf16.msra.mxu0 %v587
    %642 = vmatpush.bf16.msra.mxu0 %v583
    %643 = vmatpush.bf16.msra.mxu0 %v579
    %644 = vmatpush.bf16.msra.mxu0 %v575
    %645 = vmatpush.bf16.msra.mxu0 %v571
    %646 = vmatpush.bf16.msra.mxu0 %v567
    %647 = vmatpush.bf16.msra.mxu0 %v563
    %648 = vmatmul.bf16.gmra.mxu0 %v130
    %v649 = vpop.f32.mrf.mxu0
    %v650 = vadd.f32 %v459, %v649
    %v651 = vpop.f32.mrf.mxu0
    %v652 = vadd.f32 %v459, %v651
    %653 = vdwg.mxu0
    %654 = vmatpush.bf16.msra.mxu0 %v592
    %655 = vmatpush.bf16.msra.mxu0 %v588
    %656 = vmatpush.bf16.msra.mxu0 %v584
    %657 = vmatpush.bf16.msra.mxu0 %v580
    %658 = vmatpush.bf16.msra.mxu0 %v576
    %659 = vmatpush.bf16.msra.mxu0 %v572
    %660 = vmatpush.bf16.msra.mxu0 %v568
    %661 = vmatpush.bf16.msra.mxu0 %v564
    %662 = vmatmul.bf16.gmra.mxu0 %v130
    %v663 = vpop.f32.mrf.mxu0
    %v664 = vadd.f32 %v460, %v663
    %v665 = vpop.f32.mrf.mxu0
    %v666 = vadd.f32 %v460, %v665
    %667 = vdwg.mxu0
    %668 = vmatpush.bf16.msra.mxu0 %v593
    %669 = vmatpush.bf16.msra.mxu0 %v589
    %670 = vmatpush.bf16.msra.mxu0 %v585
    %671 = vmatpush.bf16.msra.mxu0 %v581
    %672 = vmatpush.bf16.msra.mxu0 %v577
    %673 = vmatpush.bf16.msra.mxu0 %v573
    %674 = vmatpush.bf16.msra.mxu0 %v569
    %675 = vmatpush.bf16.msra.mxu0 %v565
    %676 = vmatmul.bf16.gmra.mxu0 %v130
    %v677 = vpop.f32.mrf.mxu0
    %v678 = vadd.f32 %v461, %v677
    %v679 = vpop.f32.mrf.mxu0
    %v680 = vadd.f32 %v461, %v679
    %681 = vdwg.mxu0
    %v682 = vmax.f32 %v636, 0.0
    %v683 = vmax.f32 %v650, 0.0
    %v684 = vmax.f32 %v664, 0.0
    %v685 = vmax.f32 %v678, 0.0
    %v686 = vmax.f32 %v638, 0.0
    %v687 = vmax.f32 %v652, 0.0
    %v688 = vmax.f32 %v666, 0.0
    %v689 = vmax.f32 %v680, 0.0
    %v690 = vpack.c.bf16 %v686, %v682
    %v691 = vpack.c.bf16 %v687, %v683
    %v692 = vpack.c.bf16 %v688, %v684
    %v693 = vpack.c.bf16 %v689, %v685
    %v694 = vld [vmem:[#allocation8 + $0x100] sm:$0xf]
    %v695 = vld [vmem:[#allocation8 + $0x104] sm:$0xf]
    %v696 = vld [vmem:[#allocation8 + $0x108] sm:$0xf]
    %v697 = vld [vmem:[#allocation8 + $0x10c] sm:$0xf]
    %v698 = vld [vmem:[#allocation8 + $0x110] sm:$0xf]
    %v699 = vld [vmem:[#allocation8 + $0x114] sm:$0xf]
    %v700 = vld [vmem:[#allocation8 + $0x118] sm:$0xf]
    %v701 = vld [vmem:[#allocation8 + $0x11c] sm:$0xf]
    %v702 = vld [vmem:[#allocation8 + $0x120] sm:$0xf]
    %v703 = vld [vmem:[#allocation8 + $0x124] sm:$0xf]
    %v704 = vld [vmem:[#allocation8 + $0x128] sm:$0xf]
    %v705 = vld [vmem:[#allocation8 + $0x12c] sm:$0xf]
    %v706 = vld [vmem:[#allocation8 + $0x130] sm:$0xf]
    %v707 = vld [vmem:[#allocation8 + $0x134] sm:$0xf]
    %v708 = vld [vmem:[#allocation8 + $0x138] sm:$0xf]
    %v709 = vld [vmem:[#allocation8 + $0x13c] sm:$0xf]
    %v710 = vld [vmem:[#allocation8 + $0x140] sm:$0xf]
    %v711 = vld [vmem:[#allocation8 + $0x144] sm:$0xf]
    %v712 = vld [vmem:[#allocation8 + $0x148] sm:$0xf]
    %v713 = vld [vmem:[#allocation8 + $0x14c] sm:$0xf]
    %v714 = vld [vmem:[#allocation8 + $0x150] sm:$0xf]
    %v715 = vld [vmem:[#allocation8 + $0x154] sm:$0xf]
    %v716 = vld [vmem:[#allocation8 + $0x158] sm:$0xf]
    %v717 = vld [vmem:[#allocation8 + $0x15c] sm:$0xf]
    %v718 = vld [vmem:[#allocation8 + $0x160] sm:$0xf]
    %v719 = vld [vmem:[#allocation8 + $0x164] sm:$0xf]
    %v720 = vld [vmem:[#allocation8 + $0x168] sm:$0xf]
    %v721 = vld [vmem:[#allocation8 + $0x16c] sm:$0xf]
    %v722 = vld [vmem:[#allocation8 + $0x170] sm:$0xf]
    %v723 = vld [vmem:[#allocation8 + $0x174] sm:$0xf]
    %v724 = vld [vmem:[#allocation8 + $0x178] sm:$0xf]
    %v725 = vld [vmem:[#allocation8 + $0x17c] sm:$0xf]
    %v726 = vld [vmem:[#allocation8 + $0x180] sm:$0xf]
    %v727 = vld [vmem:[#allocation8 + $0x184] sm:$0xf]
    %v728 = vld [vmem:[#allocation8 + $0x188] sm:$0xf]
    %v729 = vld [vmem:[#allocation8 + $0x18c] sm:$0xf]
    %v730 = vld [vmem:[#allocation8 + $0x190] sm:$0xf]
    %v731 = vld [vmem:[#allocation8 + $0x194] sm:$0xf]
    %v732 = vld [vmem:[#allocation8 + $0x198] sm:$0xf]
    %v733 = vld [vmem:[#allocation8 + $0x19c] sm:$0xf]
    %v734 = vld [vmem:[#allocation8 + $0x1a0] sm:$0xf]
    %v735 = vld [vmem:[#allocation8 + $0x1a4] sm:$0xf]
    %v736 = vld [vmem:[#allocation8 + $0x1a8] sm:$0xf]
    %v737 = vld [vmem:[#allocation8 + $0x1ac] sm:$0xf]
    %v738 = vld [vmem:[#allocation8 + $0x1b0] sm:$0xf]
    %v739 = vld [vmem:[#allocation8 + $0x1b4] sm:$0xf]
    %v740 = vld [vmem:[#allocation8 + $0x1b8] sm:$0xf]
    %v741 = vld [vmem:[#allocation8 + $0x1bc] sm:$0xf]
    %v742 = vld [vmem:[#allocation8 + $0x1c0] sm:$0xf]
    %v743 = vld [vmem:[#allocation8 + $0x1c4] sm:$0xf]
    %v744 = vld [vmem:[#allocation8 + $0x1c8] sm:$0xf]
    %v745 = vld [vmem:[#allocation8 + $0x1cc] sm:$0xf]
    %v746 = vld [vmem:[#allocation8 + $0x1d0] sm:$0xf]
    %v747 = vld [vmem:[#allocation8 + $0x1d4] sm:$0xf]
    %v748 = vld [vmem:[#allocation8 + $0x1d8] sm:$0xf]
    %v749 = vld [vmem:[#allocation8 + $0x1dc] sm:$0xf]
    %v750 = vld [vmem:[#allocation8 + $0x1e0] sm:$0xf]
    %v751 = vld [vmem:[#allocation8 + $0x1e4] sm:$0xf]
    %v752 = vld [vmem:[#allocation8 + $0x1e8] sm:$0xf]
    %v753 = vld [vmem:[#allocation8 + $0x1ec] sm:$0xf]
    %v754 = vld [vmem:[#allocation8 + $0x1f0] sm:$0xf]
    %v755 = vld [vmem:[#allocation8 + $0x1f4] sm:$0xf]
    %v756 = vld [vmem:[#allocation8 + $0x1f8] sm:$0xf]
    %v757 = vld [vmem:[#allocation8 + $0x1fc] sm:$0xf]
    %v822 = vunpack.c.l.b16 %v694
    %v823 = vunpack.c.l.b16 %v695
    %v824 = vunpack.c.l.b16 %v696
    %v825 = vunpack.c.l.b16 %v697
    %v826 = vunpack.c.l.b16 %v698
    %v827 = vunpack.c.l.b16 %v699
    %v828 = vunpack.c.l.b16 %v700
    %v829 = vunpack.c.l.b16 %v701
    %v830 = vunpack.c.l.b16 %v702
    %v831 = vunpack.c.l.b16 %v703
    %v832 = vunpack.c.l.b16 %v704
    %v833 = vunpack.c.l.b16 %v705
    %v834 = vunpack.c.l.b16 %v706
    %v835 = vunpack.c.l.b16 %v707
    %v836 = vunpack.c.l.b16 %v708
    %v837 = vunpack.c.l.b16 %v709
    %v838 = vunpack.c.l.b16 %v710
    %v839 = vunpack.c.l.b16 %v711
    %v840 = vunpack.c.l.b16 %v712
    %v841 = vunpack.c.l.b16 %v713
    %v842 = vunpack.c.l.b16 %v714
    %v843 = vunpack.c.l.b16 %v715
    %v844 = vunpack.c.l.b16 %v716
    %v845 = vunpack.c.l.b16 %v717
    %v846 = vunpack.c.l.b16 %v718
    %v847 = vunpack.c.l.b16 %v719
    %v848 = vunpack.c.l.b16 %v720
    %v849 = vunpack.c.l.b16 %v721
    %v850 = vunpack.c.l.b16 %v722
    %v851 = vunpack.c.l.b16 %v723
    %v852 = vunpack.c.l.b16 %v724
    %v853 = vunpack.c.l.b16 %v725
    %v854 = vunpack.c.l.b16 %v726
    %v855 = vunpack.c.l.b16 %v727
    %v856 = vunpack.c.l.b16 %v728
    %v857 = vunpack.c.l.b16 %v729
    %v858 = vunpack.c.l.b16 %v730
    %v859 = vunpack.c.l.b16 %v731
    %v860 = vunpack.c.l.b16 %v732
    %v861 = vunpack.c.l.b16 %v733
    %v862 = vunpack.c.l.b16 %v734
    %v863 = vunpack.c.l.b16 %v735
    %v864 = vunpack.c.l.b16 %v736
    %v865 = vunpack.c.l.b16 %v737
    %v866 = vunpack.c.l.b16 %v738
    %v867 = vunpack.c.l.b16 %v739
    %v868 = vunpack.c.l.b16 %v740
    %v869 = vunpack.c.l.b16 %v741
    %v870 = vunpack.c.l.b16 %v742
    %v871 = vunpack.c.l.b16 %v743
    %v872 = vunpack.c.l.b16 %v744
    %v873 = vunpack.c.l.b16 %v745
    %v874 = vunpack.c.l.b16 %v746
    %v875 = vunpack.c.l.b16 %v747
    %v876 = vunpack.c.l.b16 %v748
    %v877 = vunpack.c.l.b16 %v749
    %v878 = vunpack.c.l.b16 %v750
    %v879 = vunpack.c.l.b16 %v751
    %v880 = vunpack.c.l.b16 %v752
    %v881 = vunpack.c.l.b16 %v753
    %v882 = vunpack.c.l.b16 %v754
    %v883 = vunpack.c.l.b16 %v755
    %v884 = vunpack.c.l.b16 %v756
    %v885 = vunpack.c.l.b16 %v757
    %v886 = vpack.c.b16 %v823, %v822
    %v887 = vpack.c.b16 %v825, %v824
    %v888 = vpack.c.b16 %v827, %v826
    %v889 = vpack.c.b16 %v829, %v828
    %v890 = vpack.c.b16 %v831, %v830
    %v891 = vpack.c.b16 %v833, %v832
    %v892 = vpack.c.b16 %v835, %v834
    %v893 = vpack.c.b16 %v837, %v836
    %v894 = vpack.c.b16 %v839, %v838
    %v895 = vpack.c.b16 %v841, %v840
    %v896 = vpack.c.b16 %v843, %v842
    %v897 = vpack.c.b16 %v845, %v844
    %v898 = vpack.c.b16 %v847, %v846
    %v899 = vpack.c.b16 %v849, %v848
    %v900 = vpack.c.b16 %v851, %v850
    %v901 = vpack.c.b16 %v853, %v852
    %v902 = vpack.c.b16 %v855, %v854
    %v903 = vpack.c.b16 %v857, %v856
    %v904 = vpack.c.b16 %v859, %v858
    %v905 = vpack.c.b16 %v861, %v860
    %v906 = vpack.c.b16 %v863, %v862
    %v907 = vpack.c.b16 %v865, %v864
    %v908 = vpack.c.b16 %v867, %v866
    %v909 = vpack.c.b16 %v869, %v868
    %v910 = vpack.c.b16 %v871, %v870
    %v911 = vpack.c.b16 %v873, %v872
    %v912 = vpack.c.b16 %v875, %v874
    %v913 = vpack.c.b16 %v877, %v876
    %v914 = vpack.c.b16 %v879, %v878
    %v915 = vpack.c.b16 %v881, %v880
    %v916 = vpack.c.b16 %v883, %v882
    %v917 = vpack.c.b16 %v885, %v884
    %950 = vmatpush.bf16.msra.mxu0 %v893
    %951 = vmatpush.bf16.msra.mxu0 %v892
    %952 = vmatpush.bf16.msra.mxu0 %v891
    %953 = vmatpush.bf16.msra.mxu0 %v890
    %954 = vmatpush.bf16.msra.mxu0 %v889
    %955 = vmatpush.bf16.msra.mxu0 %v888
    %956 = vmatpush.bf16.msra.mxu0 %v887
    %957 = vmatpush.bf16.msra.mxu0 %v886
    %958 = vmatmul.bf16.gmra.mxu0 %v690
    %v959 = vpop.f32.mrf.mxu0
    %v960 = vadd.f32 0.0, %v959
    %v961 = vpop.f32.mrf.mxu0
    %v962 = vadd.f32 0.0, %v961
    %963 = vdwg.mxu0
    %964 = vmatpush.bf16.msra.mxu0 %v901
    %965 = vmatpush.bf16.msra.mxu0 %v900
    %966 = vmatpush.bf16.msra.mxu0 %v899
    %967 = vmatpush.bf16.msra.mxu0 %v898
    %968 = vmatpush.bf16.msra.mxu0 %v897
    %969 = vmatpush.bf16.msra.mxu0 %v896
    %970 = vmatpush.bf16.msra.mxu0 %v895
    %971 = vmatpush.bf16.msra.mxu0 %v894
    %972 = vmatmul.bf16.gmra.mxu0 %v691
    %v973 = vpop.f32.mrf.mxu0
    %v974 = vadd.f32 %v960, %v973
    %v975 = vpop.f32.mrf.mxu0
    %v976 = vadd.f32 %v962, %v975
    %977 = vdwg.mxu0
    %978 = vmatpush.bf16.msra.mxu0 %v909
    %979 = vmatpush.bf16.msra.mxu0 %v908
    %980 = vmatpush.bf16.msra.mxu0 %v907
    %981 = vmatpush.bf16.msra.mxu0 %v906
    %982 = vmatpush.bf16.msra.mxu0 %v905
    %983 = vmatpush.bf16.msra.mxu0 %v904
    %984 = vmatpush.bf16.msra.mxu0 %v903
    %985 = vmatpush.bf16.msra.mxu0 %v902
    %986 = vmatmul.bf16.gmra.mxu0 %v692
    %v987 = vpop.f32.mrf.mxu0
    %v988 = vadd.f32 %v974, %v987
    %v989 = vpop.f32.mrf.mxu0
    %v990 = vadd.f32 %v976, %v989
    %991 = vdwg.mxu0
    %992 = vmatpush.bf16.msra.mxu0 %v917
    %993 = vmatpush.bf16.msra.mxu0 %v916
    %994 = vmatpush.bf16.msra.mxu0 %v915
    %995 = vmatpush.bf16.msra.mxu0 %v914
    %996 = vmatpush.bf16.msra.mxu0 %v913
    %997 = vmatpush.bf16.msra.mxu0 %v912
    %998 = vmatpush.bf16.msra.mxu0 %v911
    %999 = vmatpush.bf16.msra.mxu0 %v910
    %1000 = vmatmul.bf16.gmra.mxu0 %v693
    %v1001 = vpop.f32.mrf.mxu0
    %v1002 = vadd.f32 %v988, %v1001
    %v1003 = vpop.f32.mrf.mxu0
    %v1004 = vadd.f32 %v990, %v1003
    %1005 = vdwg.mxu0
    %v1070 = vunpack.c.l.b16 %v360
    %v1071 = vunpack.c.l.b16 %v361
    %v1072 = vunpack.c.l.b16 %v362
    %v1073 = vunpack.c.l.b16 %v363
    %v1074 = vunpack.c.l.b16 %v364
    %v1075 = vunpack.c.l.b16 %v365
    %v1076 = vunpack.c.l.b16 %v366
    %v1077 = vunpack.c.l.b16 %v367
    %v1078 = vunpack.c.l.b16 %v368
    %v1079 = vunpack.c.l.b16 %v369
    %v1080 = vunpack.c.l.b16 %v370
    %v1081 = vunpack.c.l.b16 %v371
    %v1082 = vunpack.c.l.b16 %v372
    %v1083 = vunpack.c.l.b16 %v373
    %v1084 = vunpack.c.l.b16 %v374
    %v1085 = vunpack.c.l.b16 %v375
    %v1086 = vunpack.c.l.b16 %v376
    %v1087 = vunpack.c.l.b16 %v377
    %v1088 = vunpack.c.l.b16 %v378
    %v1089 = vunpack.c.l.b16 %v379
    %v1090 = vunpack.c.l.b16 %v380
    %v1091 = vunpack.c.l.b16 %v381
    %v1092 = vunpack.c.l.b16 %v382
    %v1093 = vunpack.c.l.b16 %v383
    %v1094 = vunpack.c.l.b16 %v384
    %v1095 = vunpack.c.l.b16 %v385
    %v1096 = vunpack.c.l.b16 %v386
    %v1097 = vunpack.c.l.b16 %v387
    %v1098 = vunpack.c.l.b16 %v388
    %v1099 = vunpack.c.l.b16 %v389
    %v1100 = vunpack.c.l.b16 %v390
    %v1101 = vunpack.c.l.b16 %v391
    %v1102 = vunpack.c.l.b16 %v392
    %v1103 = vunpack.c.l.b16 %v393
    %v1104 = vunpack.c.l.b16 %v394
    %v1105 = vunpack.c.l.b16 %v395
    %v1106 = vunpack.c.l.b16 %v396
    %v1107 = vunpack.c.l.b16 %v397
    %v1108 = vunpack.c.l.b16 %v398
    %v1109 = vunpack.c.l.b16 %v399
    %v1110 = vunpack.c.l.b16 %v400
    %v1111 = vunpack.c.l.b16 %v401
    %v1112 = vunpack.c.l.b16 %v402
    %v1113 = vunpack.c.l.b16 %v403
    %v1114 = vunpack.c.l.b16 %v404
    %v1115 = vunpack.c.l.b16 %v405
    %v1116 = vunpack.c.l.b16 %v406
    %v1117 = vunpack.c.l.b16 %v407
    %v1118 = vunpack.c.l.b16 %v408
    %v1119 = vunpack.c.l.b16 %v409
    %v1120 = vunpack.c.l.b16 %v410
    %v1121 = vunpack.c.l.b16 %v411
    %v1122 = vunpack.c.l.b16 %v412
    %v1123 = vunpack.c.l.b16 %v413
    %v1124 = vunpack.c.l.b16 %v414
    %v1125 = vunpack.c.l.b16 %v415
    %v1126 = vunpack.c.l.b16 %v416
    %v1127 = vunpack.c.l.b16 %v417
    %v1128 = vunpack.c.l.b16 %v418
    %v1129 = vunpack.c.l.b16 %v419
    %v1130 = vunpack.c.l.b16 %v420
    %v1131 = vunpack.c.l.b16 %v421
    %v1132 = vunpack.c.l.b16 %v422
    %v1133 = vunpack.c.l.b16 %v423
    %v1134 = vpack.c.b16 %v1071, %v1070
    %v1135 = vpack.c.b16 %v1073, %v1072
    %v1136 = vpack.c.b16 %v1075, %v1074
    %v1137 = vpack.c.b16 %v1077, %v1076
    %v1138 = vpack.c.b16 %v1079, %v1078
    %v1139 = vpack.c.b16 %v1081, %v1080
    %v1140 = vpack.c.b16 %v1083, %v1082
    %v1141 = vpack.c.b16 %v1085, %v1084
    %v1142 = vpack.c.b16 %v1087, %v1086
    %v1143 = vpack.c.b16 %v1089, %v1088
    %v1144 = vpack.c.b16 %v1091, %v1090
    %v1145 = vpack.c.b16 %v1093, %v1092
    %v1146 = vpack.c.b16 %v1095, %v1094
    %v1147 = vpack.c.b16 %v1097, %v1096
    %v1148 = vpack.c.b16 %v1099, %v1098
    %v1149 = vpack.c.b16 %v1101, %v1100
    %v1150 = vpack.c.b16 %v1103, %v1102
    %v1151 = vpack.c.b16 %v1105, %v1104
    %v1152 = vpack.c.b16 %v1107, %v1106
    %v1153 = vpack.c.b16 %v1109, %v1108
    %v1154 = vpack.c.b16 %v1111, %v1110
    %v1155 = vpack.c.b16 %v1113, %v1112
    %v1156 = vpack.c.b16 %v1115, %v1114
    %v1157 = vpack.c.b16 %v1117, %v1116
    %v1158 = vpack.c.b16 %v1119, %v1118
    %v1159 = vpack.c.b16 %v1121, %v1120
    %v1160 = vpack.c.b16 %v1123, %v1122
    %v1161 = vpack.c.b16 %v1125, %v1124
    %v1162 = vpack.c.b16 %v1127, %v1126
    %v1163 = vpack.c.b16 %v1129, %v1128
    %v1164 = vpack.c.b16 %v1131, %v1130
    %v1165 = vpack.c.b16 %v1133, %v1132
    %1198 = vmatpush.bf16.msra.mxu0 %v1141
    %1199 = vmatpush.bf16.msra.mxu0 %v1140
    %1200 = vmatpush.bf16.msra.mxu0 %v1139
    %1201 = vmatpush.bf16.msra.mxu0 %v1138
    %1202 = vmatpush.bf16.msra.mxu0 %v1137
    %1203 = vmatpush.bf16.msra.mxu0 %v1136
    %1204 = vmatpush.bf16.msra.mxu0 %v1135
    %1205 = vmatpush.bf16.msra.mxu0 %v1134
    %1206 = vmatmul.bf16.gmra.mxu0 %v356
    %v1207 = vpop.f32.mrf.mxu0
    %v1208 = vadd.f32 %v1002, %v1207
    %v1209 = vpop.f32.mrf.mxu0
    %v1210 = vadd.f32 %v1004, %v1209
    %1211 = vdwg.mxu0
    %1212 = vmatpush.bf16.msra.mxu0 %v1149
    %1213 = vmatpush.bf16.msra.mxu0 %v1148
    %1214 = vmatpush.bf16.msra.mxu0 %v1147
    %1215 = vmatpush.bf16.msra.mxu0 %v1146
    %1216 = vmatpush.bf16.msra.mxu0 %v1145
    %1217 = vmatpush.bf16.msra.mxu0 %v1144
    %1218 = vmatpush.bf16.msra.mxu0 %v1143
    %1219 = vmatpush.bf16.msra.mxu0 %v1142
    %1220 = vmatmul.bf16.gmra.mxu0 %v357
    %v1221 = vpop.f32.mrf.mxu0
    %v1222 = vadd.f32 %v1208, %v1221
    %v1223 = vpop.f32.mrf.mxu0
    %v1224 = vadd.f32 %v1210, %v1223
    %1225 = vdwg.mxu0
    %1226 = vmatpush.bf16.msra.mxu0 %v1157
    %1227 = vmatpush.bf16.msra.mxu0 %v1156
    %1228 = vmatpush.bf16.msra.mxu0 %v1155
    %1229 = vmatpush.bf16.msra.mxu0 %v1154
    %1230 = vmatpush.bf16.msra.mxu0 %v1153
    %1231 = vmatpush.bf16.msra.mxu0 %v1152
    %1232 = vmatpush.bf16.msra.mxu0 %v1151
    %1233 = vmatpush.bf16.msra.mxu0 %v1150
    %1234 = vmatmul.bf16.gmra.mxu0 %v358
    %v1235 = vpop.f32.mrf.mxu0
    %v1236 = vadd.f32 %v1222, %v1235
    %v1237 = vpop.f32.mrf.mxu0
    %v1238 = vadd.f32 %v1224, %v1237
    %1239 = vdwg.mxu0
    %1240 = vmatpush.bf16.msra.mxu0 %v1165
    %1241 = vmatpush.bf16.msra.mxu0 %v1164
    %1242 = vmatpush.bf16.msra.mxu0 %v1163
    %1243 = vmatpush.bf16.msra.mxu0 %v1162
    %1244 = vmatpush.bf16.msra.mxu0 %v1161
    %1245 = vmatpush.bf16.msra.mxu0 %v1160
    %1246 = vmatpush.bf16.msra.mxu0 %v1159
    %1247 = vmatpush.bf16.msra.mxu0 %v1158
    %1248 = vmatmul.bf16.gmra.mxu0 %v359
    %v1249 = vpop.f32.mrf.mxu0
    %v1250 = vadd.f32 %v1236, %v1249
    %v1251 = vpop.f32.mrf.mxu0
    %v1252 = vadd.f32 %v1238, %v1251
    %1253 = vdwg.mxu0
    %v1254 = vld [vmem:[#allocation5 + $0x20] sm:$0xff]
    %v1255 = vld [vmem:[#allocation5 + $0x28] sm:$0xff]
    %v1256 = vld [vmem:[#allocation5 + $0x60] sm:$0xff]
    %v1257 = vld [vmem:[#allocation5 + $0x68] sm:$0xff]
    %v1258 = vld [vmem:[#allocation5 + $0xa0] sm:$0xff]
    %v1259 = vld [vmem:[#allocation5 + $0xa8] sm:$0xff]
    %v1260 = vld [vmem:[#allocation5 + $0xe0] sm:$0xff]
    %v1261 = vld [vmem:[#allocation5 + $0xe8] sm:$0xff]
    %v1262 = vld [vmem:[#allocation5 + $0x120] sm:$0xff]
    %v1263 = vld [vmem:[#allocation5 + $0x128] sm:$0xff]
    %v1264 = vld [vmem:[#allocation5 + $0x160] sm:$0xff]
    %v1265 = vld [vmem:[#allocation5 + $0x168] sm:$0xff]
    %v1266 = vld [vmem:[#allocation5 + $0x1a0] sm:$0xff]
    %v1267 = vld [vmem:[#allocation5 + $0x1a8] sm:$0xff]
    %v1268 = vld [vmem:[#allocation5 + $0x1e0] sm:$0xff]
    %v1269 = vld [vmem:[#allocation5 + $0x1e8] sm:$0xff]
    %v1270 = vld [vmem:[#allocation5 + $0x220] sm:$0xff]
    %v1271 = vld [vmem:[#allocation5 + $0x228] sm:$0xff]
    %v1272 = vld [vmem:[#allocation5 + $0x260] sm:$0xff]
    %v1273 = vld [vmem:[#allocation5 + $0x268] sm:$0xff]
    %v1274 = vld [vmem:[#allocation5 + $0x2a0] sm:$0xff]
    %v1275 = vld [vmem:[#allocation5 + $0x2a8] sm:$0xff]
    %v1276 = vld [vmem:[#allocation5 + $0x2e0] sm:$0xff]
    %v1277 = vld [vmem:[#allocation5 + $0x2e8] sm:$0xff]
    %v1278 = vld [vmem:[#allocation5 + $0x320] sm:$0xff]
    %v1279 = vld [vmem:[#allocation5 + $0x328] sm:$0xff]
    %v1280 = vld [vmem:[#allocation5 + $0x360] sm:$0xff]
    %v1281 = vld [vmem:[#allocation5 + $0x368] sm:$0xff]
    %v1282 = vld [vmem:[#allocation5 + $0x3a0] sm:$0xff]
    %v1283 = vld [vmem:[#allocation5 + $0x3a8] sm:$0xff]
    %v1284 = vld [vmem:[#allocation5 + $0x3e0] sm:$0xff]
    %v1285 = vld [vmem:[#allocation5 + $0x3e8] sm:$0xff]
    %v1286 = vld [vmem:[#allocation7 + $0x8] sm:$0xf]
    %v1288 = vperm.slane %v1286, 0
    %v1289 = vperm.slane %v1286, 1
    %v1290 = vperm.slane %v1286, 2
    %v1291 = vperm.slane %v1286, 3
    %v1328 = vunpack.c.l.b16 %v1254
    %v1329 = vunpack.c.h.b16 %v1254
    %v1330 = vunpack.c.l.b16 %v1255
    %v1331 = vunpack.c.h.b16 %v1255
    %v1332 = vunpack.c.l.b16 %v1256
    %v1333 = vunpack.c.h.b16 %v1256
    %v1334 = vunpack.c.l.b16 %v1257
    %v1335 = vunpack.c.h.b16 %v1257
    %v1336 = vunpack.c.l.b16 %v1258
    %v1337 = vunpack.c.h.b16 %v1258
    %v1338 = vunpack.c.l.b16 %v1259
    %v1339 = vunpack.c.h.b16 %v1259
    %v1340 = vunpack.c.l.b16 %v1260
    %v1341 = vunpack.c.h.b16 %v1260
    %v1342 = vunpack.c.l.b16 %v1261
    %v1343 = vunpack.c.h.b16 %v1261
    %v1344 = vunpack.c.l.b16 %v1262
    %v1345 = vunpack.c.h.b16 %v1262
    %v1346 = vunpack.c.l.b16 %v1263
    %v1347 = vunpack.c.h.b16 %v1263
    %v1348 = vunpack.c.l.b16 %v1264
    %v1349 = vunpack.c.h.b16 %v1264
    %v1350 = vunpack.c.l.b16 %v1265
    %v1351 = vunpack.c.h.b16 %v1265
    %v1352 = vunpack.c.l.b16 %v1266
    %v1353 = vunpack.c.h.b16 %v1266
    %v1354 = vunpack.c.l.b16 %v1267
    %v1355 = vunpack.c.h.b16 %v1267
    %v1356 = vunpack.c.l.b16 %v1268
    %v1357 = vunpack.c.h.b16 %v1268
    %v1358 = vunpack.c.l.b16 %v1269
    %v1359 = vunpack.c.h.b16 %v1269
    %v1360 = vunpack.c.l.b16 %v1270
    %v1361 = vunpack.c.h.b16 %v1270
    %v1362 = vunpack.c.l.b16 %v1271
    %v1363 = vunpack.c.h.b16 %v1271
    %v1364 = vunpack.c.l.b16 %v1272
    %v1365 = vunpack.c.h.b16 %v1272
    %v1366 = vunpack.c.l.b16 %v1273
    %v1367 = vunpack.c.h.b16 %v1273
    %v1368 = vunpack.c.l.b16 %v1274
    %v1369 = vunpack.c.h.b16 %v1274
    %v1370 = vunpack.c.l.b16 %v1275
    %v1371 = vunpack.c.h.b16 %v1275
    %v1372 = vunpack.c.l.b16 %v1276
    %v1373 = vunpack.c.h.b16 %v1276
    %v1374 = vunpack.c.l.b16 %v1277
    %v1375 = vunpack.c.h.b16 %v1277
    %v1376 = vunpack.c.l.b16 %v1278
    %v1377 = vunpack.c.h.b16 %v1278
    %v1378 = vunpack.c.l.b16 %v1279
    %v1379 = vunpack.c.h.b16 %v1279
    %v1380 = vunpack.c.l.b16 %v1280
    %v1381 = vunpack.c.h.b16 %v1280
    %v1382 = vunpack.c.l.b16 %v1281
    %v1383 = vunpack.c.h.b16 %v1281
    %v1384 = vunpack.c.l.b16 %v1282
    %v1385 = vunpack.c.h.b16 %v1282
    %v1386 = vunpack.c.l.b16 %v1283
    %v1387 = vunpack.c.h.b16 %v1283
    %v1388 = vunpack.c.l.b16 %v1284
    %v1389 = vunpack.c.h.b16 %v1284
    %v1390 = vunpack.c.l.b16 %v1285
    %v1391 = vunpack.c.h.b16 %v1285
    %v1392 = vpack.c.b16 %v1332, %v1328
    %v1393 = vpack.c.b16 %v1333, %v1329
    %v1394 = vpack.c.b16 %v1334, %v1330
    %v1395 = vpack.c.b16 %v1335, %v1331
    %v1396 = vpack.c.b16 %v1340, %v1336
    %v1397 = vpack.c.b16 %v1341, %v1337
    %v1398 = vpack.c.b16 %v1342, %v1338
    %v1399 = vpack.c.b16 %v1343, %v1339
    %v1400 = vpack.c.b16 %v1348, %v1344
    %v1401 = vpack.c.b16 %v1349, %v1345
    %v1402 = vpack.c.b16 %v1350, %v1346
    %v1403 = vpack.c.b16 %v1351, %v1347
    %v1404 = vpack.c.b16 %v1356, %v1352
    %v1405 = vpack.c.b16 %v1357, %v1353
    %v1406 = vpack.c.b16 %v1358, %v1354
    %v1407 = vpack.c.b16 %v1359, %v1355
    %v1408 = vpack.c.b16 %v1364, %v1360
    %v1409 = vpack.c.b16 %v1365, %v1361
    %v1410 = vpack.c.b16 %v1366, %v1362
    %v1411 = vpack.c.b16 %v1367, %v1363
    %v1412 = vpack.c.b16 %v1372, %v1368
    %v1413 = vpack.c.b16 %v1373, %v1369
    %v1414 = vpack.c.b16 %v1374, %v1370
    %v1415 = vpack.c.b16 %v1375, %v1371
    %v1416 = vpack.c.b16 %v1380, %v1376
    %v1417 = vpack.c.b16 %v1381, %v1377
    %v1418 = vpack.c.b16 %v1382, %v1378
    %v1419 = vpack.c.b16 %v1383, %v1379
    %v1420 = vpack.c.b16 %v1388, %v1384
    %v1421 = vpack.c.b16 %v1389, %v1385
    %v1422 = vpack.c.b16 %v1390, %v1386
    %v1423 = vpack.c.b16 %v1391, %v1387
    %1456 = vmatpush.bf16.msra.mxu0 %v1420
    %1457 = vmatpush.bf16.msra.mxu0 %v1416
    %1458 = vmatpush.bf16.msra.mxu0 %v1412
    %1459 = vmatpush.bf16.msra.mxu0 %v1408
    %1460 = vmatpush.bf16.msra.mxu0 %v1404
    %1461 = vmatpush.bf16.msra.mxu0 %v1400
    %1462 = vmatpush.bf16.msra.mxu0 %v1396
    %1463 = vmatpush.bf16.msra.mxu0 %v1392
    %1464 = vmatmul.bf16.gmra.mxu0 %v130
    %v1465 = vpop.f32.mrf.mxu0
    %v1466 = vadd.f32 %v1288, %v1465
    %v1467 = vpop.f32.mrf.mxu0
    %v1468 = vadd.f32 %v1288, %v1467
    %1469 = vdwg.mxu0
    %1470 = vmatpush.bf16.msra.mxu0 %v1421
    %1471 = vmatpush.bf16.msra.mxu0 %v1417
    %1472 = vmatpush.bf16.msra.mxu0 %v1413
    %1473 = vmatpush.bf16.msra.mxu0 %v1409
    %1474 = vmatpush.bf16.msra.mxu0 %v1405
    %1475 = vmatpush.bf16.msra.mxu0 %v1401
    %1476 = vmatpush.bf16.msra.mxu0 %v1397
    %1477 = vmatpush.bf16.msra.mxu0 %v1393
    %1478 = vmatmul.bf16.gmra.mxu0 %v130
    %v1479 = vpop.f32.mrf.mxu0
    %v1480 = vadd.f32 %v1289, %v1479
    %v1481 = vpop.f32.mrf.mxu0
    %v1482 = vadd.f32 %v1289, %v1481
    %1483 = vdwg.mxu0
    %1484 = vmatpush.bf16.msra.mxu0 %v1422
    %1485 = vmatpush.bf16.msra.mxu0 %v1418
    %1486 = vmatpush.bf16.msra.mxu0 %v1414
    %1487 = vmatpush.bf16.msra.mxu0 %v1410
    %1488 = vmatpush.bf16.msra.mxu0 %v1406
    %1489 = vmatpush.bf16.msra.mxu0 %v1402
    %1490 = vmatpush.bf16.msra.mxu0 %v1398
    %1491 = vmatpush.bf16.msra.mxu0 %v1394
    %1492 = vmatmul.bf16.gmra.mxu0 %v130
    %v1493 = vpop.f32.mrf.mxu0
    %v1494 = vadd.f32 %v1290, %v1493
    %v1495 = vpop.f32.mrf.mxu0
    %v1496 = vadd.f32 %v1290, %v1495
    %1497 = vdwg.mxu0
    %1498 = vmatpush.bf16.msra.mxu0 %v1423
    %1499 = vmatpush.bf16.msra.mxu0 %v1419
    %1500 = vmatpush.bf16.msra.mxu0 %v1415
    %1501 = vmatpush.bf16.msra.mxu0 %v1411
    %1502 = vmatpush.bf16.msra.mxu0 %v1407
    %1503 = vmatpush.bf16.msra.mxu0 %v1403
    %1504 = vmatpush.bf16.msra.mxu0 %v1399
    %1505 = vmatpush.bf16.msra.mxu0 %v1395
    %1506 = vmatmul.bf16.gmra.mxu0 %v130
    %v1507 = vpop.f32.mrf.mxu0
    %v1508 = vadd.f32 %v1291, %v1507
    %v1509 = vpop.f32.mrf.mxu0
    %v1510 = vadd.f32 %v1291, %v1509
    %1511 = vdwg.mxu0
    %v1512 = vmax.f32 %v1466, 0.0
    %v1513 = vmax.f32 %v1480, 0.0
    %v1514 = vmax.f32 %v1494, 0.0
    %v1515 = vmax.f32 %v1508, 0.0
    %v1516 = vmax.f32 %v1468, 0.0
    %v1517 = vmax.f32 %v1482, 0.0
    %v1518 = vmax.f32 %v1496, 0.0
    %v1519 = vmax.f32 %v1510, 0.0
    %v1520 = vpack.c.bf16 %v1516, %v1512
    %v1521 = vpack.c.bf16 %v1517, %v1513
    %v1522 = vpack.c.bf16 %v1518, %v1514
    %v1523 = vpack.c.bf16 %v1519, %v1515
    %v1524 = vld [vmem:[#allocation8 + $0x200] sm:$0xf]
    %v1525 = vld [vmem:[#allocation8 + $0x204] sm:$0xf]
    %v1526 = vld [vmem:[#allocation8 + $0x208] sm:$0xf]
    %v1527 = vld [vmem:[#allocation8 + $0x20c] sm:$0xf]
    %v1528 = vld [vmem:[#allocation8 + $0x210] sm:$0xf]
    %v1529 = vld [vmem:[#allocation8 + $0x214] sm:$0xf]
    %v1530 = vld [vmem:[#allocation8 + $0x218] sm:$0xf]
    %v1531 = vld [vmem:[#allocation8 + $0x21c] sm:$0xf]
    %v1532 = vld [vmem:[#allocation8 + $0x220] sm:$0xf]
    %v1533 = vld [vmem:[#allocation8 + $0x224] sm:$0xf]
    %v1534 = vld [vmem:[#allocation8 + $0x228] sm:$0xf]
    %v1535 = vld [vmem:[#allocation8 + $0x22c] sm:$0xf]
    %v1536 = vld [vmem:[#allocation8 + $0x230] sm:$0xf]
    %v1537 = vld [vmem:[#allocation8 + $0x234] sm:$0xf]
    %v1538 = vld [vmem:[#allocation8 + $0x238] sm:$0xf]
    %v1539 = vld [vmem:[#allocation8 + $0x23c] sm:$0xf]
    %v1540 = vld [vmem:[#allocation8 + $0x240] sm:$0xf]
    %v1541 = vld [vmem:[#allocation8 + $0x244] sm:$0xf]
    %v1542 = vld [vmem:[#allocation8 + $0x248] sm:$0xf]
    %v1543 = vld [vmem:[#allocation8 + $0x24c] sm:$0xf]
    %v1544 = vld [vmem:[#allocation8 + $0x250] sm:$0xf]
    %v1545 = vld [vmem:[#allocation8 + $0x254] sm:$0xf]
    %v1546 = vld [vmem:[#allocation8 + $0x258] sm:$0xf]
    %v1547 = vld [vmem:[#allocation8 + $0x25c] sm:$0xf]
    %v1548 = vld [vmem:[#allocation8 + $0x260] sm:$0xf]
    %v1549 = vld [vmem:[#allocation8 + $0x264] sm:$0xf]
    %v1550 = vld [vmem:[#allocation8 + $0x268] sm:$0xf]
    %v1551 = vld [vmem:[#allocation8 + $0x26c] sm:$0xf]
    %v1552 = vld [vmem:[#allocation8 + $0x270] sm:$0xf]
    %v1553 = vld [vmem:[#allocation8 + $0x274] sm:$0xf]
    %v1554 = vld [vmem:[#allocation8 + $0x278] sm:$0xf]
    %v1555 = vld [vmem:[#allocation8 + $0x27c] sm:$0xf]
    %v1556 = vld [vmem:[#allocation8 + $0x280] sm:$0xf]
    %v1557 = vld [vmem:[#allocation8 + $0x284] sm:$0xf]
    %v1558 = vld [vmem:[#allocation8 + $0x288] sm:$0xf]
    %v1559 = vld [vmem:[#allocation8 + $0x28c] sm:$0xf]
    %v1560 = vld [vmem:[#allocation8 + $0x290] sm:$0xf]
    %v1561 = vld [vmem:[#allocation8 + $0x294] sm:$0xf]
    %v1562 = vld [vmem:[#allocation8 + $0x298] sm:$0xf]
    %v1563 = vld [vmem:[#allocation8 + $0x29c] sm:$0xf]
    %v1564 = vld [vmem:[#allocation8 + $0x2a0] sm:$0xf]
    %v1565 = vld [vmem:[#allocation8 + $0x2a4] sm:$0xf]
    %v1566 = vld [vmem:[#allocation8 + $0x2a8] sm:$0xf]
    %v1567 = vld [vmem:[#allocation8 + $0x2ac] sm:$0xf]
    %v1568 = vld [vmem:[#allocation8 + $0x2b0] sm:$0xf]
    %v1569 = vld [vmem:[#allocation8 + $0x2b4] sm:$0xf]
    %v1570 = vld [vmem:[#allocation8 + $0x2b8] sm:$0xf]
    %v1571 = vld [vmem:[#allocation8 + $0x2bc] sm:$0xf]
    %v1572 = vld [vmem:[#allocation8 + $0x2c0] sm:$0xf]
    %v1573 = vld [vmem:[#allocation8 + $0x2c4] sm:$0xf]
    %v1574 = vld [vmem:[#allocation8 + $0x2c8] sm:$0xf]
    %v1575 = vld [vmem:[#allocation8 + $0x2cc] sm:$0xf]
    %v1576 = vld [vmem:[#allocation8 + $0x2d0] sm:$0xf]
    %v1577 = vld [vmem:[#allocation8 + $0x2d4] sm:$0xf]
    %v1578 = vld [vmem:[#allocation8 + $0x2d8] sm:$0xf]
    %v1579 = vld [vmem:[#allocation8 + $0x2dc] sm:$0xf]
    %v1580 = vld [vmem:[#allocation8 + $0x2e0] sm:$0xf]
    %v1581 = vld [vmem:[#allocation8 + $0x2e4] sm:$0xf]
    %v1582 = vld [vmem:[#allocation8 + $0x2e8] sm:$0xf]
    %v1583 = vld [vmem:[#allocation8 + $0x2ec] sm:$0xf]
    %v1584 = vld [vmem:[#allocation8 + $0x2f0] sm:$0xf]
    %v1585 = vld [vmem:[#allocation8 + $0x2f4] sm:$0xf]
    %v1586 = vld [vmem:[#allocation8 + $0x2f8] sm:$0xf]
    %v1587 = vld [vmem:[#allocation8 + $0x2fc] sm:$0xf]
    %v1652 = vunpack.c.l.b16 %v1524
    %v1653 = vunpack.c.l.b16 %v1525
    %v1654 = vunpack.c.l.b16 %v1526
    %v1655 = vunpack.c.l.b16 %v1527
    %v1656 = vunpack.c.l.b16 %v1528
    %v1657 = vunpack.c.l.b16 %v1529
    %v1658 = vunpack.c.l.b16 %v1530
    %v1659 = vunpack.c.l.b16 %v1531
    %v1660 = vunpack.c.l.b16 %v1532
    %v1661 = vunpack.c.l.b16 %v1533
    %v1662 = vunpack.c.l.b16 %v1534
    %v1663 = vunpack.c.l.b16 %v1535
    %v1664 = vunpack.c.l.b16 %v1536
    %v1665 = vunpack.c.l.b16 %v1537
    %v1666 = vunpack.c.l.b16 %v1538
    %v1667 = vunpack.c.l.b16 %v1539
    %v1668 = vunpack.c.l.b16 %v1540
    %v1669 = vunpack.c.l.b16 %v1541
    %v1670 = vunpack.c.l.b16 %v1542
    %v1671 = vunpack.c.l.b16 %v1543
    %v1672 = vunpack.c.l.b16 %v1544
    %v1673 = vunpack.c.l.b16 %v1545
    %v1674 = vunpack.c.l.b16 %v1546
    %v1675 = vunpack.c.l.b16 %v1547
    %v1676 = vunpack.c.l.b16 %v1548
    %v1677 = vunpack.c.l.b16 %v1549
    %v1678 = vunpack.c.l.b16 %v1550
    %v1679 = vunpack.c.l.b16 %v1551
    %v1680 = vunpack.c.l.b16 %v1552
    %v1681 = vunpack.c.l.b16 %v1553
    %v1682 = vunpack.c.l.b16 %v1554
    %v1683 = vunpack.c.l.b16 %v1555
    %v1684 = vunpack.c.l.b16 %v1556
    %v1685 = vunpack.c.l.b16 %v1557
    %v1686 = vunpack.c.l.b16 %v1558
    %v1687 = vunpack.c.l.b16 %v1559
    %v1688 = vunpack.c.l.b16 %v1560
    %v1689 = vunpack.c.l.b16 %v1561
    %v1690 = vunpack.c.l.b16 %v1562
    %v1691 = vunpack.c.l.b16 %v1563
    %v1692 = vunpack.c.l.b16 %v1564
    %v1693 = vunpack.c.l.b16 %v1565
    %v1694 = vunpack.c.l.b16 %v1566
    %v1695 = vunpack.c.l.b16 %v1567
    %v1696 = vunpack.c.l.b16 %v1568
    %v1697 = vunpack.c.l.b16 %v1569
    %v1698 = vunpack.c.l.b16 %v1570
    %v1699 = vunpack.c.l.b16 %v1571
    %v1700 = vunpack.c.l.b16 %v1572
    %v1701 = vunpack.c.l.b16 %v1573
    %v1702 = vunpack.c.l.b16 %v1574
    %v1703 = vunpack.c.l.b16 %v1575
    %v1704 = vunpack.c.l.b16 %v1576
    %v1705 = vunpack.c.l.b16 %v1577
    %v1706 = vunpack.c.l.b16 %v1578
    %v1707 = vunpack.c.l.b16 %v1579
    %v1708 = vunpack.c.l.b16 %v1580
    %v1709 = vunpack.c.l.b16 %v1581
    %v1710 = vunpack.c.l.b16 %v1582
    %v1711 = vunpack.c.l.b16 %v1583
    %v1712 = vunpack.c.l.b16 %v1584
    %v1713 = vunpack.c.l.b16 %v1585
    %v1714 = vunpack.c.l.b16 %v1586
    %v1715 = vunpack.c.l.b16 %v1587
    %v1716 = vpack.c.b16 %v1653, %v1652
    %v1717 = vpack.c.b16 %v1655, %v1654
    %v1718 = vpack.c.b16 %v1657, %v1656
    %v1719 = vpack.c.b16 %v1659, %v1658
    %v1720 = vpack.c.b16 %v1661, %v1660
    %v1721 = vpack.c.b16 %v1663, %v1662
    %v1722 = vpack.c.b16 %v1665, %v1664
    %v1723 = vpack.c.b16 %v1667, %v1666
    %v1724 = vpack.c.b16 %v1669, %v1668
    %v1725 = vpack.c.b16 %v1671, %v1670
    %v1726 = vpack.c.b16 %v1673, %v1672
    %v1727 = vpack.c.b16 %v1675, %v1674
    %v1728 = vpack.c.b16 %v1677, %v1676
    %v1729 = vpack.c.b16 %v1679, %v1678
    %v1730 = vpack.c.b16 %v1681, %v1680
    %v1731 = vpack.c.b16 %v1683, %v1682
    %v1732 = vpack.c.b16 %v1685, %v1684
    %v1733 = vpack.c.b16 %v1687, %v1686
    %v1734 = vpack.c.b16 %v1689, %v1688
    %v1735 = vpack.c.b16 %v1691, %v1690
    %v1736 = vpack.c.b16 %v1693, %v1692
    %v1737 = vpack.c.b16 %v1695, %v1694
    %v1738 = vpack.c.b16 %v1697, %v1696
    %v1739 = vpack.c.b16 %v1699, %v1698
    %v1740 = vpack.c.b16 %v1701, %v1700
    %v1741 = vpack.c.b16 %v1703, %v1702
    %v1742 = vpack.c.b16 %v1705, %v1704
    %v1743 = vpack.c.b16 %v1707, %v1706
    %v1744 = vpack.c.b16 %v1709, %v1708
    %v1745 = vpack.c.b16 %v1711, %v1710
    %v1746 = vpack.c.b16 %v1713, %v1712
    %v1747 = vpack.c.b16 %v1715, %v1714
    %1780 = vmatpush.bf16.msra.mxu0 %v1723
    %1781 = vmatpush.bf16.msra.mxu0 %v1722
    %1782 = vmatpush.bf16.msra.mxu0 %v1721
    %1783 = vmatpush.bf16.msra.mxu0 %v1720
    %1784 = vmatpush.bf16.msra.mxu0 %v1719
    %1785 = vmatpush.bf16.msra.mxu0 %v1718
    %1786 = vmatpush.bf16.msra.mxu0 %v1717
    %1787 = vmatpush.bf16.msra.mxu0 %v1716
    %1788 = vmatmul.bf16.gmra.mxu0 %v1520
    %v1789 = vpop.f32.mrf.mxu0
    %v1790 = vadd.f32 0.0, %v1789
    %v1791 = vpop.f32.mrf.mxu0
    %v1792 = vadd.f32 0.0, %v1791
    %1793 = vdwg.mxu0
    %1794 = vmatpush.bf16.msra.mxu0 %v1731
    %1795 = vmatpush.bf16.msra.mxu0 %v1730
    %1796 = vmatpush.bf16.msra.mxu0 %v1729
    %1797 = vmatpush.bf16.msra.mxu0 %v1728
    %1798 = vmatpush.bf16.msra.mxu0 %v1727
    %1799 = vmatpush.bf16.msra.mxu0 %v1726
    %1800 = vmatpush.bf16.msra.mxu0 %v1725
    %1801 = vmatpush.bf16.msra.mxu0 %v1724
    %1802 = vmatmul.bf16.gmra.mxu0 %v1521
    %v1803 = vpop.f32.mrf.mxu0
    %v1804 = vadd.f32 %v1790, %v1803
    %v1805 = vpop.f32.mrf.mxu0
    %v1806 = vadd.f32 %v1792, %v1805
    %1807 = vdwg.mxu0
    %1808 = vmatpush.bf16.msra.mxu0 %v1739
    %1809 = vmatpush.bf16.msra.mxu0 %v1738
    %1810 = vmatpush.bf16.msra.mxu0 %v1737
    %1811 = vmatpush.bf16.msra.mxu0 %v1736
    %1812 = vmatpush.bf16.msra.mxu0 %v1735
    %1813 = vmatpush.bf16.msra.mxu0 %v1734
    %1814 = vmatpush.bf16.msra.mxu0 %v1733
    %1815 = vmatpush.bf16.msra.mxu0 %v1732
    %1816 = vmatmul.bf16.gmra.mxu0 %v1522
    %v1817 = vpop.f32.mrf.mxu0
    %v1818 = vadd.f32 %v1804, %v1817
    %v1819 = vpop.f32.mrf.mxu0
    %v1820 = vadd.f32 %v1806, %v1819
    %1821 = vdwg.mxu0
    %1822 = vmatpush.bf16.msra.mxu0 %v1747
    %1823 = vmatpush.bf16.msra.mxu0 %v1746
    %1824 = vmatpush.bf16.msra.mxu0 %v1745
    %1825 = vmatpush.bf16.msra.mxu0 %v1744
    %1826 = vmatpush.bf16.msra.mxu0 %v1743
    %1827 = vmatpush.bf16.msra.mxu0 %v1742
    %1828 = vmatpush.bf16.msra.mxu0 %v1741
    %1829 = vmatpush.bf16.msra.mxu0 %v1740
    %1830 = vmatmul.bf16.gmra.mxu0 %v1523
    %v1831 = vpop.f32.mrf.mxu0
    %v1832 = vadd.f32 %v1818, %v1831
    %v1833 = vpop.f32.mrf.mxu0
    %v1834 = vadd.f32 %v1820, %v1833
    %1835 = vdwg.mxu0
    %v1836 = vadd.f32 %v1250, %v1832
    %v1837 = vadd.f32 %v1252, %v1834
    %v1838 = vld [vmem:[#allocation5 + $0x30] sm:$0xff]
    %v1839 = vld [vmem:[#allocation5 + $0x38] sm:$0xff]
    %v1840 = vld [vmem:[#allocation5 + $0x70] sm:$0xff]
    %v1841 = vld [vmem:[#allocation5 + $0x78] sm:$0xff]
    %v1842 = vld [vmem:[#allocation5 + $0xb0] sm:$0xff]
    %v1843 = vld [vmem:[#allocation5 + $0xb8] sm:$0xff]
    %v1844 = vld [vmem:[#allocation5 + $0xf0] sm:$0xff]
    %v1845 = vld [vmem:[#allocation5 + $0xf8] sm:$0xff]
    %v1846 = vld [vmem:[#allocation5 + $0x130] sm:$0xff]
    %v1847 = vld [vmem:[#allocation5 + $0x138] sm:$0xff]
    %v1848 = vld [vmem:[#allocation5 + $0x170] sm:$0xff]
    %v1849 = vld [vmem:[#allocation5 + $0x178] sm:$0xff]
    %v1850 = vld [vmem:[#allocation5 + $0x1b0] sm:$0xff]
    %v1851 = vld [vmem:[#allocation5 + $0x1b8] sm:$0xff]
    %v1852 = vld [vmem:[#allocation5 + $0x1f0] sm:$0xff]
    %v1853 = vld [vmem:[#allocation5 + $0x1f8] sm:$0xff]
    %v1854 = vld [vmem:[#allocation5 + $0x230] sm:$0xff]
    %v1855 = vld [vmem:[#allocation5 + $0x238] sm:$0xff]
    %v1856 = vld [vmem:[#allocation5 + $0x270] sm:$0xff]
    %v1857 = vld [vmem:[#allocation5 + $0x278] sm:$0xff]
    %v1858 = vld [vmem:[#allocation5 + $0x2b0] sm:$0xff]
    %v1859 = vld [vmem:[#allocation5 + $0x2b8] sm:$0xff]
    %v1860 = vld [vmem:[#allocation5 + $0x2f0] sm:$0xff]
    %v1861 = vld [vmem:[#allocation5 + $0x2f8] sm:$0xff]
    %v1862 = vld [vmem:[#allocation5 + $0x330] sm:$0xff]
    %v1863 = vld [vmem:[#allocation5 + $0x338] sm:$0xff]
    %v1864 = vld [vmem:[#allocation5 + $0x370] sm:$0xff]
    %v1865 = vld [vmem:[#allocation5 + $0x378] sm:$0xff]
    %v1866 = vld [vmem:[#allocation5 + $0x3b0] sm:$0xff]
    %v1867 = vld [vmem:[#allocation5 + $0x3b8] sm:$0xff]
    %v1868 = vld [vmem:[#allocation5 + $0x3f0] sm:$0xff]
    %v1869 = vld [vmem:[#allocation5 + $0x3f8] sm:$0xff]
    %v1870 = vld [vmem:[#allocation7 + $0xc] sm:$0xf]
    %v1872 = vperm.slane %v1870, 0
    %v1873 = vperm.slane %v1870, 1
    %v1874 = vperm.slane %v1870, 2
    %v1875 = vperm.slane %v1870, 3
    %v1912 = vunpack.c.l.b16 %v1838
    %v1913 = vunpack.c.h.b16 %v1838
    %v1914 = vunpack.c.l.b16 %v1839
    %v1915 = vunpack.c.h.b16 %v1839
    %v1916 = vunpack.c.l.b16 %v1840
    %v1917 = vunpack.c.h.b16 %v1840
    %v1918 = vunpack.c.l.b16 %v1841
    %v1919 = vunpack.c.h.b16 %v1841
    %v1920 = vunpack.c.l.b16 %v1842
    %v1921 = vunpack.c.h.b16 %v1842
    %v1922 = vunpack.c.l.b16 %v1843
    %v1923 = vunpack.c.h.b16 %v1843
    %v1924 = vunpack.c.l.b16 %v1844
    %v1925 = vunpack.c.h.b16 %v1844
    %v1926 = vunpack.c.l.b16 %v1845
    %v1927 = vunpack.c.h.b16 %v1845
    %v1928 = vunpack.c.l.b16 %v1846
    %v1929 = vunpack.c.h.b16 %v1846
    %v1930 = vunpack.c.l.b16 %v1847
    %v1931 = vunpack.c.h.b16 %v1847
    %v1932 = vunpack.c.l.b16 %v1848
    %v1933 = vunpack.c.h.b16 %v1848
    %v1934 = vunpack.c.l.b16 %v1849
    %v1935 = vunpack.c.h.b16 %v1849
    %v1936 = vunpack.c.l.b16 %v1850
    %v1937 = vunpack.c.h.b16 %v1850
    %v1938 = vunpack.c.l.b16 %v1851
    %v1939 = vunpack.c.h.b16 %v1851
    %v1940 = vunpack.c.l.b16 %v1852
    %v1941 = vunpack.c.h.b16 %v1852
    %v1942 = vunpack.c.l.b16 %v1853
    %v1943 = vunpack.c.h.b16 %v1853
    %v1944 = vunpack.c.l.b16 %v1854
    %v1945 = vunpack.c.h.b16 %v1854
    %v1946 = vunpack.c.l.b16 %v1855
    %v1947 = vunpack.c.h.b16 %v1855
    %v1948 = vunpack.c.l.b16 %v1856
    %v1949 = vunpack.c.h.b16 %v1856
    %v1950 = vunpack.c.l.b16 %v1857
    %v1951 = vunpack.c.h.b16 %v1857
    %v1952 = vunpack.c.l.b16 %v1858
    %v1953 = vunpack.c.h.b16 %v1858
    %v1954 = vunpack.c.l.b16 %v1859
    %v1955 = vunpack.c.h.b16 %v1859
    %v1956 = vunpack.c.l.b16 %v1860
    %v1957 = vunpack.c.h.b16 %v1860
    %v1958 = vunpack.c.l.b16 %v1861
    %v1959 = vunpack.c.h.b16 %v1861
    %v1960 = vunpack.c.l.b16 %v1862
    %v1961 = vunpack.c.h.b16 %v1862
    %v1962 = vunpack.c.l.b16 %v1863
    %v1963 = vunpack.c.h.b16 %v1863
    %v1964 = vunpack.c.l.b16 %v1864
    %v1965 = vunpack.c.h.b16 %v1864
    %v1966 = vunpack.c.l.b16 %v1865
    %v1967 = vunpack.c.h.b16 %v1865
    %v1968 = vunpack.c.l.b16 %v1866
    %v1969 = vunpack.c.h.b16 %v1866
    %v1970 = vunpack.c.l.b16 %v1867
    %v1971 = vunpack.c.h.b16 %v1867
    %v1972 = vunpack.c.l.b16 %v1868
    %v1973 = vunpack.c.h.b16 %v1868
    %v1974 = vunpack.c.l.b16 %v1869
    %v1975 = vunpack.c.h.b16 %v1869
    %v1976 = vpack.c.b16 %v1916, %v1912
    %v1977 = vpack.c.b16 %v1917, %v1913
    %v1978 = vpack.c.b16 %v1918, %v1914
    %v1979 = vpack.c.b16 %v1919, %v1915
    %v1980 = vpack.c.b16 %v1924, %v1920
    %v1981 = vpack.c.b16 %v1925, %v1921
    %v1982 = vpack.c.b16 %v1926, %v1922
    %v1983 = vpack.c.b16 %v1927, %v1923
    %v1984 = vpack.c.b16 %v1932, %v1928
    %v1985 = vpack.c.b16 %v1933, %v1929
    %v1986 = vpack.c.b16 %v1934, %v1930
    %v1987 = vpack.c.b16 %v1935, %v1931
    %v1988 = vpack.c.b16 %v1940, %v1936
    %v1989 = vpack.c.b16 %v1941, %v1937
    %v1990 = vpack.c.b16 %v1942, %v1938
    %v1991 = vpack.c.b16 %v1943, %v1939
    %v1992 = vpack.c.b16 %v1948, %v1944
    %v1993 = vpack.c.b16 %v1949, %v1945
    %v1994 = vpack.c.b16 %v1950, %v1946
    %v1995 = vpack.c.b16 %v1951, %v1947
    %v1996 = vpack.c.b16 %v1956, %v1952
    %v1997 = vpack.c.b16 %v1957, %v1953
    %v1998 = vpack.c.b16 %v1958, %v1954
    %v1999 = vpack.c.b16 %v1959, %v1955
    %v2000 = vpack.c.b16 %v1964, %v1960
    %v2001 = vpack.c.b16 %v1965, %v1961
    %v2002 = vpack.c.b16 %v1966, %v1962
    %v2003 = vpack.c.b16 %v1967, %v1963
    %v2004 = vpack.c.b16 %v1972, %v1968
    %v2005 = vpack.c.b16 %v1973, %v1969
    %v2006 = vpack.c.b16 %v1974, %v1970
    %v2007 = vpack.c.b16 %v1975, %v1971
    %2040 = vmatpush.bf16.msra.mxu0 %v2004
    %2041 = vmatpush.bf16.msra.mxu0 %v2000
    %2042 = vmatpush.bf16.msra.mxu0 %v1996
    %2043 = vmatpush.bf16.msra.mxu0 %v1992
    %2044 = vmatpush.bf16.msra.mxu0 %v1988
    %2045 = vmatpush.bf16.msra.mxu0 %v1984
    %2046 = vmatpush.bf16.msra.mxu0 %v1980
    %2047 = vmatpush.bf16.msra.mxu0 %v1976
    %2048 = vmatmul.bf16.gmra.mxu0 %v130
    %v2049 = vpop.f32.mrf.mxu0
    %v2050 = vadd.f32 %v1872, %v2049
    %v2051 = vpop.f32.mrf.mxu0
    %v2052 = vadd.f32 %v1872, %v2051
    %2053 = vdwg.mxu0
    %2054 = vmatpush.bf16.msra.mxu0 %v2005
    %2055 = vmatpush.bf16.msra.mxu0 %v2001
    %2056 = vmatpush.bf16.msra.mxu0 %v1997
    %2057 = vmatpush.bf16.msra.mxu0 %v1993
    %2058 = vmatpush.bf16.msra.mxu0 %v1989
    %2059 = vmatpush.bf16.msra.mxu0 %v1985
    %2060 = vmatpush.bf16.msra.mxu0 %v1981
    %2061 = vmatpush.bf16.msra.mxu0 %v1977
    %2062 = vmatmul.bf16.gmra.mxu0 %v130
    %v2063 = vpop.f32.mrf.mxu0
    %v2064 = vadd.f32 %v1873, %v2063
    %v2065 = vpop.f32.mrf.mxu0
    %v2066 = vadd.f32 %v1873, %v2065
    %2067 = vdwg.mxu0
    %2068 = vmatpush.bf16.msra.mxu0 %v2006
    %2069 = vmatpush.bf16.msra.mxu0 %v2002
    %2070 = vmatpush.bf16.msra.mxu0 %v1998
    %2071 = vmatpush.bf16.msra.mxu0 %v1994
    %2072 = vmatpush.bf16.msra.mxu0 %v1990
    %2073 = vmatpush.bf16.msra.mxu0 %v1986
    %2074 = vmatpush.bf16.msra.mxu0 %v1982
    %2075 = vmatpush.bf16.msra.mxu0 %v1978
    %2076 = vmatmul.bf16.gmra.mxu0 %v130
    %v2077 = vpop.f32.mrf.mxu0
    %v2078 = vadd.f32 %v1874, %v2077
    %v2079 = vpop.f32.mrf.mxu0
    %v2080 = vadd.f32 %v1874, %v2079
    %2081 = vdwg.mxu0
    %2082 = vmatpush.bf16.msra.mxu0 %v2007
    %2083 = vmatpush.bf16.msra.mxu0 %v2003
    %2084 = vmatpush.bf16.msra.mxu0 %v1999
    %2085 = vmatpush.bf16.msra.mxu0 %v1995
    %2086 = vmatpush.bf16.msra.mxu0 %v1991
    %2087 = vmatpush.bf16.msra.mxu0 %v1987
    %2088 = vmatpush.bf16.msra.mxu0 %v1983
    %2089 = vmatpush.bf16.msra.mxu0 %v1979
    %2090 = vmatmul.bf16.gmra.mxu0 %v130
    %v2091 = vpop.f32.mrf.mxu0
    %v2092 = vadd.f32 %v1875, %v2091
    %v2093 = vpop.f32.mrf.mxu0
    %v2094 = vadd.f32 %v1875, %v2093
    %2095 = vdwg.mxu0
    %v2096 = vmax.f32 %v2050, 0.0
    %v2097 = vmax.f32 %v2064, 0.0
    %v2098 = vmax.f32 %v2078, 0.0
    %v2099 = vmax.f32 %v2092, 0.0
    %v2100 = vmax.f32 %v2052, 0.0
    %v2101 = vmax.f32 %v2066, 0.0
    %v2102 = vmax.f32 %v2080, 0.0
    %v2103 = vmax.f32 %v2094, 0.0
    %v2104 = vpack.c.bf16 %v2100, %v2096
    %v2105 = vpack.c.bf16 %v2101, %v2097
    %v2106 = vpack.c.bf16 %v2102, %v2098
    %v2107 = vpack.c.bf16 %v2103, %v2099
    %v2108 = vld [vmem:[#allocation8 + $0x300] sm:$0xf]
    %v2109 = vld [vmem:[#allocation8 + $0x304] sm:$0xf]
    %v2110 = vld [vmem:[#allocation8 + $0x308] sm:$0xf]
    %v2111 = vld [vmem:[#allocation8 + $0x30c] sm:$0xf]
    %v2112 = vld [vmem:[#allocation8 + $0x310] sm:$0xf]
    %v2113 = vld [vmem:[#allocation8 + $0x314] sm:$0xf]
    %v2114 = vld [vmem:[#allocation8 + $0x318] sm:$0xf]
    %v2115 = vld [vmem:[#allocation8 + $0x31c] sm:$0xf]
    %v2116 = vld [vmem:[#allocation8 + $0x320] sm:$0xf]
    %v2117 = vld [vmem:[#allocation8 + $0x324] sm:$0xf]
    %v2118 = vld [vmem:[#allocation8 + $0x328] sm:$0xf]
    %v2119 = vld [vmem:[#allocation8 + $0x32c] sm:$0xf]
    %v2120 = vld [vmem:[#allocation8 + $0x330] sm:$0xf]
    %v2121 = vld [vmem:[#allocation8 + $0x334] sm:$0xf]
    %v2122 = vld [vmem:[#allocation8 + $0x338] sm:$0xf]
    %v2123 = vld [vmem:[#allocation8 + $0x33c] sm:$0xf]
    %v2124 = vld [vmem:[#allocation8 + $0x340] sm:$0xf]
    %v2125 = vld [vmem:[#allocation8 + $0x344] sm:$0xf]
    %v2126 = vld [vmem:[#allocation8 + $0x348] sm:$0xf]
    %v2127 = vld [vmem:[#allocation8 + $0x34c] sm:$0xf]
    %v2128 = vld [vmem:[#allocation8 + $0x350] sm:$0xf]
    %v2129 = vld [vmem:[#allocation8 + $0x354] sm:$0xf]
    %v2130 = vld [vmem:[#allocation8 + $0x358] sm:$0xf]
    %v2131 = vld [vmem:[#allocation8 + $0x35c] sm:$0xf]
    %v2132 = vld [vmem:[#allocation8 + $0x360] sm:$0xf]
    %v2133 = vld [vmem:[#allocation8 + $0x364] sm:$0xf]
    %v2134 = vld [vmem:[#allocation8 + $0x368] sm:$0xf]
    %v2135 = vld [vmem:[#allocation8 + $0x36c] sm:$0xf]
    %v2136 = vld [vmem:[#allocation8 + $0x370] sm:$0xf]
    %v2137 = vld [vmem:[#allocation8 + $0x374] sm:$0xf]
    %v2138 = vld [vmem:[#allocation8 + $0x378] sm:$0xf]
    %v2139 = vld [vmem:[#allocation8 + $0x37c] sm:$0xf]
    %v2140 = vld [vmem:[#allocation8 + $0x380] sm:$0xf]
    %v2141 = vld [vmem:[#allocation8 + $0x384] sm:$0xf]
    %v2142 = vld [vmem:[#allocation8 + $0x388] sm:$0xf]
    %v2143 = vld [vmem:[#allocation8 + $0x38c] sm:$0xf]
    %v2144 = vld [vmem:[#allocation8 + $0x390] sm:$0xf]
    %v2145 = vld [vmem:[#allocation8 + $0x394] sm:$0xf]
    %v2146 = vld [vmem:[#allocation8 + $0x398] sm:$0xf]
    %v2147 = vld [vmem:[#allocation8 + $0x39c] sm:$0xf]
    %v2148 = vld [vmem:[#allocation8 + $0x3a0] sm:$0xf]
    %v2149 = vld [vmem:[#allocation8 + $0x3a4] sm:$0xf]
    %v2150 = vld [vmem:[#allocation8 + $0x3a8] sm:$0xf]
    %v2151 = vld [vmem:[#allocation8 + $0x3ac] sm:$0xf]
    %v2152 = vld [vmem:[#allocation8 + $0x3b0] sm:$0xf]
    %v2153 = vld [vmem:[#allocation8 + $0x3b4] sm:$0xf]
    %v2154 = vld [vmem:[#allocation8 + $0x3b8] sm:$0xf]
    %v2155 = vld [vmem:[#allocation8 + $0x3bc] sm:$0xf]
    %v2156 = vld [vmem:[#allocation8 + $0x3c0] sm:$0xf]
    %v2157 = vld [vmem:[#allocation8 + $0x3c4] sm:$0xf]
    %v2158 = vld [vmem:[#allocation8 + $0x3c8] sm:$0xf]
    %v2159 = vld [vmem:[#allocation8 + $0x3cc] sm:$0xf]
    %v2160 = vld [vmem:[#allocation8 + $0x3d0] sm:$0xf]
    %v2161 = vld [vmem:[#allocation8 + $0x3d4] sm:$0xf]
    %v2162 = vld [vmem:[#allocation8 + $0x3d8] sm:$0xf]
    %v2163 = vld [vmem:[#allocation8 + $0x3dc] sm:$0xf]
    %v2164 = vld [vmem:[#allocation8 + $0x3e0] sm:$0xf]
    %v2165 = vld [vmem:[#allocation8 + $0x3e4] sm:$0xf]
    %v2166 = vld [vmem:[#allocation8 + $0x3e8] sm:$0xf]
    %v2167 = vld [vmem:[#allocation8 + $0x3ec] sm:$0xf]
    %v2168 = vld [vmem:[#allocation8 + $0x3f0] sm:$0xf]
    %v2169 = vld [vmem:[#allocation8 + $0x3f4] sm:$0xf]
    %v2170 = vld [vmem:[#allocation8 + $0x3f8] sm:$0xf]
    %v2171 = vld [vmem:[#allocation8 + $0x3fc] sm:$0xf]
    %v2236 = vunpack.c.l.b16 %v2108
    %v2237 = vunpack.c.l.b16 %v2109
    %v2238 = vunpack.c.l.b16 %v2110
    %v2239 = vunpack.c.l.b16 %v2111
    %v2240 = vunpack.c.l.b16 %v2112
    %v2241 = vunpack.c.l.b16 %v2113
    %v2242 = vunpack.c.l.b16 %v2114
    %v2243 = vunpack.c.l.b16 %v2115
    %v2244 = vunpack.c.l.b16 %v2116
    %v2245 = vunpack.c.l.b16 %v2117
    %v2246 = vunpack.c.l.b16 %v2118
    %v2247 = vunpack.c.l.b16 %v2119
    %v2248 = vunpack.c.l.b16 %v2120
    %v2249 = vunpack.c.l.b16 %v2121
    %v2250 = vunpack.c.l.b16 %v2122
    %v2251 = vunpack.c.l.b16 %v2123
    %v2252 = vunpack.c.l.b16 %v2124
    %v2253 = vunpack.c.l.b16 %v2125
    %v2254 = vunpack.c.l.b16 %v2126
    %v2255 = vunpack.c.l.b16 %v2127
    %v2256 = vunpack.c.l.b16 %v2128
    %v2257 = vunpack.c.l.b16 %v2129
    %v2258 = vunpack.c.l.b16 %v2130
    %v2259 = vunpack.c.l.b16 %v2131
    %v2260 = vunpack.c.l.b16 %v2132
    %v2261 = vunpack.c.l.b16 %v2133
    %v2262 = vunpack.c.l.b16 %v2134
    %v2263 = vunpack.c.l.b16 %v2135
    %v2264 = vunpack.c.l.b16 %v2136
    %v2265 = vunpack.c.l.b16 %v2137
    %v2266 = vunpack.c.l.b16 %v2138
    %v2267 = vunpack.c.l.b16 %v2139
    %v2268 = vunpack.c.l.b16 %v2140
    %v2269 = vunpack.c.l.b16 %v2141
    %v2270 = vunpack.c.l.b16 %v2142
    %v2271 = vunpack.c.l.b16 %v2143
    %v2272 = vunpack.c.l.b16 %v2144
    %v2273 = vunpack.c.l.b16 %v2145
    %v2274 = vunpack.c.l.b16 %v2146
    %v2275 = vunpack.c.l.b16 %v2147
    %v2276 = vunpack.c.l.b16 %v2148
    %v2277 = vunpack.c.l.b16 %v2149
    %v2278 = vunpack.c.l.b16 %v2150
    %v2279 = vunpack.c.l.b16 %v2151
    %v2280 = vunpack.c.l.b16 %v2152
    %v2281 = vunpack.c.l.b16 %v2153
    %v2282 = vunpack.c.l.b16 %v2154
    %v2283 = vunpack.c.l.b16 %v2155
    %v2284 = vunpack.c.l.b16 %v2156
    %v2285 = vunpack.c.l.b16 %v2157
    %v2286 = vunpack.c.l.b16 %v2158
    %v2287 = vunpack.c.l.b16 %v2159
    %v2288 = vunpack.c.l.b16 %v2160
    %v2289 = vunpack.c.l.b16 %v2161
    %v2290 = vunpack.c.l.b16 %v2162
    %v2291 = vunpack.c.l.b16 %v2163
    %v2292 = vunpack.c.l.b16 %v2164
    %v2293 = vunpack.c.l.b16 %v2165
    %v2294 = vunpack.c.l.b16 %v2166
    %v2295 = vunpack.c.l.b16 %v2167
    %v2296 = vunpack.c.l.b16 %v2168
    %v2297 = vunpack.c.l.b16 %v2169
    %v2298 = vunpack.c.l.b16 %v2170
    %v2299 = vunpack.c.l.b16 %v2171
    %v2300 = vpack.c.b16 %v2237, %v2236
    %v2301 = vpack.c.b16 %v2239, %v2238
    %v2302 = vpack.c.b16 %v2241, %v2240
    %v2303 = vpack.c.b16 %v2243, %v2242
    %v2304 = vpack.c.b16 %v2245, %v2244
    %v2305 = vpack.c.b16 %v2247, %v2246
    %v2306 = vpack.c.b16 %v2249, %v2248
    %v2307 = vpack.c.b16 %v2251, %v2250
    %v2308 = vpack.c.b16 %v2253, %v2252
    %v2309 = vpack.c.b16 %v2255, %v2254
    %v2310 = vpack.c.b16 %v2257, %v2256
    %v2311 = vpack.c.b16 %v2259, %v2258
    %v2312 = vpack.c.b16 %v2261, %v2260
    %v2313 = vpack.c.b16 %v2263, %v2262
    %v2314 = vpack.c.b16 %v2265, %v2264
    %v2315 = vpack.c.b16 %v2267, %v2266
    %v2316 = vpack.c.b16 %v2269, %v2268
    %v2317 = vpack.c.b16 %v2271, %v2270
    %v2318 = vpack.c.b16 %v2273, %v2272
    %v2319 = vpack.c.b16 %v2275, %v2274
    %v2320 = vpack.c.b16 %v2277, %v2276
    %v2321 = vpack.c.b16 %v2279, %v2278
    %v2322 = vpack.c.b16 %v2281, %v2280
    %v2323 = vpack.c.b16 %v2283, %v2282
    %v2324 = vpack.c.b16 %v2285, %v2284
    %v2325 = vpack.c.b16 %v2287, %v2286
    %v2326 = vpack.c.b16 %v2289, %v2288
    %v2327 = vpack.c.b16 %v2291, %v2290
    %v2328 = vpack.c.b16 %v2293, %v2292
    %v2329 = vpack.c.b16 %v2295, %v2294
    %v2330 = vpack.c.b16 %v2297, %v2296
    %v2331 = vpack.c.b16 %v2299, %v2298
    %2364 = vmatpush.bf16.msra.mxu0 %v2307
    %2365 = vmatpush.bf16.msra.mxu0 %v2306
    %2366 = vmatpush.bf16.msra.mxu0 %v2305
    %2367 = vmatpush.bf16.msra.mxu0 %v2304
    %2368 = vmatpush.bf16.msra.mxu0 %v2303
    %2369 = vmatpush.bf16.msra.mxu0 %v2302
    %2370 = vmatpush.bf16.msra.mxu0 %v2301
    %2371 = vmatpush.bf16.msra.mxu0 %v2300
    %2372 = vmatmul.bf16.gmra.mxu0 %v2104
    %v2373 = vpop.f32.mrf.mxu0
    %v2374 = vadd.f32 0.0, %v2373
    %v2375 = vpop.f32.mrf.mxu0
    %v2376 = vadd.f32 0.0, %v2375
    %2377 = vdwg.mxu0
    %2378 = vmatpush.bf16.msra.mxu0 %v2315
    %2379 = vmatpush.bf16.msra.mxu0 %v2314
    %2380 = vmatpush.bf16.msra.mxu0 %v2313
    %2381 = vmatpush.bf16.msra.mxu0 %v2312
    %2382 = vmatpush.bf16.msra.mxu0 %v2311
    %2383 = vmatpush.bf16.msra.mxu0 %v2310
    %2384 = vmatpush.bf16.msra.mxu0 %v2309
    %2385 = vmatpush.bf16.msra.mxu0 %v2308
    %2386 = vmatmul.bf16.gmra.mxu0 %v2105
    %v2387 = vpop.f32.mrf.mxu0
    %v2388 = vadd.f32 %v2374, %v2387
    %v2389 = vpop.f32.mrf.mxu0
    %v2390 = vadd.f32 %v2376, %v2389
    %2391 = vdwg.mxu0
    %2392 = vmatpush.bf16.msra.mxu0 %v2323
    %2393 = vmatpush.bf16.msra.mxu0 %v2322
    %2394 = vmatpush.bf16.msra.mxu0 %v2321
    %2395 = vmatpush.bf16.msra.mxu0 %v2320
    %2396 = vmatpush.bf16.msra.mxu0 %v2319
    %2397 = vmatpush.bf16.msra.mxu0 %v2318
    %2398 = vmatpush.bf16.msra.mxu0 %v2317
    %2399 = vmatpush.bf16.msra.mxu0 %v2316
    %2400 = vmatmul.bf16.gmra.mxu0 %v2106
    %v2401 = vpop.f32.mrf.mxu0
    %v2402 = vadd.f32 %v2388, %v2401
    %v2403 = vpop.f32.mrf.mxu0
    %v2404 = vadd.f32 %v2390, %v2403
    %2405 = vdwg.mxu0
    %2406 = vmatpush.bf16.msra.mxu0 %v2331
    %2407 = vmatpush.bf16.msra.mxu0 %v2330
    %2408 = vmatpush.bf16.msra.mxu0 %v2329
    %2409 = vmatpush.bf16.msra.mxu0 %v2328
    %2410 = vmatpush.bf16.msra.mxu0 %v2327
    %2411 = vmatpush.bf16.msra.mxu0 %v2326
    %2412 = vmatpush.bf16.msra.mxu0 %v2325
    %2413 = vmatpush.bf16.msra.mxu0 %v2324
    %2414 = vmatmul.bf16.gmra.mxu0 %v2107
    %v2415 = vpop.f32.mrf.mxu0
    %v2416 = vadd.f32 %v2402, %v2415
    %v2417 = vpop.f32.mrf.mxu0
    %v2418 = vadd.f32 %v2404, %v2417
    %2419 = vdwg.mxu0
    %v2420 = vadd.f32 %v1836, %v2416
    %v2421 = vadd.f32 %v1837, %v2418
    %v2422 = vld [vmem:[%s4] sm:$0x1]
    %v2424 = vperm.slane %v2422, 0
    %v2426 = vadd.f32 %v2420, %v2424
    %v2427 = vadd.f32 %v2421, %v2424
    %2428 = vst [vmem:[#allocation10] sm:$0xff] %v2426
    %2429 = vst [vmem:[#allocation10 + $0x8] sm:$0xff] %v2427
    // Predicated region
    $region38: #{tpu_custom_call.1} parent=1 // pred_check
      _
    $region39: #{tpu_custom_call.1} parent=1 // pred_check_branch
      %2431 = sbr.rel (0) target = $region41
    $region40: #{tpu_custom_call.1} parent=1 // pred_region
      %2433 = vsyncadd [#allocation4], 0
      %s2434 = sshll.u32 [#allocation10], 4
      %s2435 = int_to_ptr.vmem [resolvable:$true] %s2434
      %s2436 = sshll.u32 %s5, 4
      %s2437 = int_to_ptr.hbm [resolvable:$true] %s2436
      %2442 = dma.vmem_to_hbm [thread:$0]  %s2435, 256, %s2437, [#allocation4], 128, 128, 8
    $region41: #{tpu_custom_call.1} parent=1 // pred_fallthru
      _
    // Predicated region
    $region42: #{tpu_custom_call.1} parent=1 // pred_check
      _
    $region43: #{tpu_custom_call.1} parent=1 // pred_check_branch
      %2444 = sbr.rel (0) target = $region45
    $region44: #{tpu_custom_call.1} parent=1 // pred_region
      %2446 = dma.done [#allocation4], 256
    $region45: #{tpu_custom_call.1} parent=1 // pred_fallthru
      _
    %2447 = vsyncpa [#allocation3], 1
    %2448 = vsyncpa [#allocation6], 1
    %2449 = vsyncpa [#allocation9], 1
    %2450 = vsyncpa [#allocation4], 1

</llo_original>
